<compile_context>
chip_gen: v7x
topology: tpu7x:2x2x1
jax: 0.10.0
libtpu: 0.0.40
codegen_flags: <defaults>
</compile_context>

<pallas_src>
import math

import jax
import jax.numpy as jnp
from jax import lax
from jax.experimental import pallas as pl
from jax.experimental.pallas import tpu as pltpu


def _make_sdpa_kernel(has_rel, has_mask):
    """Build a kernel specialized for the presence of rel / mask operands."""

    def kernel(*refs):
        q_ref, k_ref, v_ref = refs[0], refs[1], refs[2]
        i = 3
        rel_ref = None
        mask_ref = None
        if has_rel:
            rel_ref = refs[i]
            i += 1
        if has_mask:
            mask_ref = refs[i]
            i += 1
        out_ref, attn_ref = refs[i], refs[i + 1]

        q = q_ref[0, 0]                      # [TQ, D], native dtype
        k = k_ref[0, 0]                      # [Sk, D]
        v = v_ref[0, 0]                      # [Sk, Dv]
        d_k = q.shape[-1]
        scale = 1.0 / math.sqrt(d_k)         # weak-typed: keeps input dtype

        # Contract last axis of both operands (Q @ K^T) without materializing
        # an explicit transpose; the MXU handles transposed-RHS natively.
        dn = (((1,), (1,)), ((), ()))
        if has_rel:
            # Fused single MXU pass: Q@K^T/sqrt(d) + Q@rel^T == Q@(K/sqrt(d)+rel)^T
            k_eff = k * scale + rel_ref[0, 0]
            scores = lax.dot_general(q, k_eff, dn,
                                     preferred_element_type=jnp.float32)
        else:
            # Scale the (small) query tile instead of the [TQ, Sk] scores.
            scores = lax.dot_general(q * scale, k, dn,
                                     preferred_element_type=jnp.float32)

        if has_mask:
            masked = mask_ref[0, 0]          # [TQ or 1, Sk] int8, 1 == fill
            scores = jnp.where(masked != 0, jnp.float32(-1.0e9), scores)

        # Numerically stable softmax over the key axis, in f32.
        m = jnp.max(scores, axis=-1, keepdims=True)
        e = jnp.exp(scores - m)
        denom = jnp.sum(e, axis=-1, keepdims=True)
        attn = e * pl.reciprocal(denom, approx=True)   # EUP slot, ~free

        # TODO(synk): nn.Dropout(0.1) is identity in eval mode; training-mode
        # stochastic dropout (pltpu.prng_*) intentionally omitted.

        out = jnp.dot(attn.astype(v.dtype), v, preferred_element_type=jnp.float32)

        attn_ref[0, 0] = attn.astype(attn_ref.dtype)
        out_ref[0, 0] = out.astype(out_ref.dtype)

    return kernel


def _pick_q_tile(sq):
    """Largest query tile <= 512 that divides Sq and is sublane-aligned."""
    if sq <= 512:
        return sq
    for cand in (512, 384, 256, 128, 64, 32, 16, 8):
        if sq % cand == 0:
            return cand
    return sq


def _bh_index_map(b_full, h_full, q_full):
    def imap(b, h, qi):
        return (b if b_full else 0, h if h_full else 0, qi if q_full else 0, 0)
    return imap


def scaled_dot_product_attention(query, key, value,
                                 relative_embeddings=None, mask=None):
    """Pallas TPU implementation of ScaledDotProductAttention.forward (eval).

    query: [B, H, Sq, D]; key: broadcastable to [B, H, Sk, D];
    value: broadcastable to [B, H, Sk, Dv]
    relative_embeddings: optional, broadcastable to [B|1, H|1, Sk, D]
    mask: optional, broadcastable to [B|1, H|1, Sq|1, Sk]; positions where
          mask == 0 are filled with -1e9 before softmax.
    Returns (output [B, H, Sq, Dv], attention_weights [B, H, Sq, Sk]).
    """
    query = jnp.asarray(query)
    B, H, Sq, D = query.shape
    key = jnp.asarray(key)
    value = jnp.asarray(value)
    Sk = key.shape[-2]
    Dv = value.shape[-1]
    dtype = query.dtype
    isz = jnp.dtype(dtype).itemsize

    TQ = _pick_q_tile(Sq)

    q = query
    k = jnp.broadcast_to(key.astype(dtype), (B, H, Sk, D))
    v = jnp.broadcast_to(value.astype(dtype), (B, H, Sk, Dv))

    has_rel = relative_embeddings is not None
    has_mask = mask is not None

    operands = [q, k, v]
    in_specs = [
        pl.BlockSpec((1, 1, TQ, D), lambda b, h, qi: (b, h, qi, 0)),
        pl.BlockSpec((1, 1, Sk, D), lambda b, h, qi: (b, h, 0, 0)),
        pl.BlockSpec((1, 1, Sk, Dv), lambda b, h, qi: (b, h, 0, 0)),
    ]

    rel_block_bytes = 0
    if has_rel:
        r = jnp.asarray(relative_embeddings, dtype=dtype)
        while r.ndim < 4:
            r = r[None]
        if r.ndim != 4:
            raise ValueError("relative_embeddings must have rank <= 4")
        rb = 1 if r.shape[0] == 1 else B
        rh = 1 if r.shape[1] == 1 else H
        r = jnp.broadcast_to(r, (rb, rh, Sk, D))   # keep 1-dims -> DMA dedup
        operands.append(r)
        in_specs.append(pl.BlockSpec((1, 1, Sk, D),
                                     _bh_index_map(rb == B, rh == H, False)))
        rel_block_bytes = Sk * D * isz

    mask_block_bytes = 0
    if has_mask:
        m = jnp.asarray(mask)
        while m.ndim < 4:
            m = m[None]
        if m.ndim != 4:
            raise ValueError("mask must have rank <= 4")
        mb = 1 if m.shape[0] == 1 else B
        mh = 1 if m.shape[1] == 1 else H
        mq = 1 if m.shape[2] == 1 else Sq
        m = jnp.broadcast_to(m, (mb, mh, mq, Sk))  # keep 1-dims -> DMA dedup
        masked = (m == 0).astype(jnp.int8)         # 1 == position to mask out
        operands.append(masked)
        if mq == 1:
            in_specs.append(pl.BlockSpec((1, 1, 1, Sk),
                                         _bh_index_map(mb == B, mh == H, False)))
            mask_block_bytes = Sk
        else:
            in_specs.append(pl.BlockSpec((1, 1, TQ, Sk),
                                         _bh_index_map(mb == B, mh == H, True)))
            mask_block_bytes = TQ * Sk

    out_specs = [
        pl.BlockSpec((1, 1, TQ, Dv), lambda b, h, qi: (b, h, qi, 0)),
        pl.BlockSpec((1, 1, TQ, Sk), lambda b, h, qi: (b, h, qi, 0)),
    ]
    out_shape = (
        jax.ShapeDtypeStruct((B, H, Sq, Dv), dtype),
        jax.ShapeDtypeStruct((B, H, Sq, Sk), dtype),
    )

    # VMEM estimate (double-buffered blocks) -> scoped limit with headroom.
    block_bytes = (TQ * D * isz                 # q tile
                   + Sk * D * isz               # k
                   + Sk * Dv * isz              # v
                   + rel_block_bytes
                   + mask_block_bytes           # int8
                   + TQ * Dv * isz              # out tile
                   + TQ * Sk * isz)             # attn tile
    vmem_limit = int(min(max(2 * block_bytes + (4 << 20), 32 << 20), 64 << 20))

    # Advisory cost for XLA scheduling around this call.
    flops = 2 * B * H * Sq * Sk * (D + Dv) + (2 * B * H * Sq * Sk * D if has_rel else 0)
    bytes_accessed = sum(int(x.size) * x.dtype.itemsize for x in operands)
    bytes_accessed += B * H * Sq * Dv * isz + B * H * Sq * Sk * isz
    cost = pl.CostEstimate(flops=int(flops),
                           transcendentals=int(B * H * Sq * Sk),
                           bytes_accessed=int(bytes_accessed))

    out, attn = pl.pallas_call(
        _make_sdpa_kernel(has_rel, has_mask),
        out_shape=out_shape,
        grid_spec=pltpu.PrefetchScalarGridSpec(
            num_scalar_prefetch=0,
            grid=(B, H, Sq // TQ),
            in_specs=in_specs,
            out_specs=out_specs,
        ),
        compiler_params=pltpu.CompilerParams(
            dimension_semantics=("parallel", "parallel", "parallel"),
            vmem_limit_bytes=vmem_limit),
        cost_estimate=cost,
    )(*operands)
    return out, attn


def _reference(query, key, value, relative_embeddings=None, mask=None):
    hi = jax.lax.Precision.HIGHEST
    d_k = query.shape[-1]
    scores = jnp.einsum("bhqd,bhkd->bhqk", query, key, precision=hi) / math.sqrt(d_k)
    if relative_embeddings is not None:
        scores = scores + jnp.einsum("bhqd,bhkd->bhqk", query,
                                     relative_embeddings, precision=hi)
    if mask is not None:
        scores = jnp.where(mask == 0, -1.0e9, scores)
    attn = jax.nn.softmax(scores, axis=-1)
    out = jnp.einsum("bhqk,bhkd->bhqd", attn, value, precision=hi)
    return out, attn


if __name__ == "__main__":
    # Pin f32 matmuls to full precision: the TPU default (single bf16 pass)
    # made the kernel and the XLA reference round differently (~1e-2).  With
    # "highest", the interpreted kernel, the Mosaic-compiled kernel (f32 MXU
    # matmuls are full precision) and the reference all agree to f32 accuracy.
    jax.config.update("jax_default_matmul_precision", "highest")

    B, H, S, D = 2, 4, 8, 32
    key0 = jax.random.PRNGKey(0)
    kq, kk, kv, kr, km = jax.random.split(key0, 5)

    query = jax.random.normal(kq, (B, H, S, D), jnp.float32)
    key_ = jax.random.normal(kk, (B, H, S, D), jnp.float32)
    value = jax.random.normal(kv, (B, H, S, D), jnp.float32)
    rel = 0.1 * jax.random.normal(kr, (B, H, S, D), jnp.float32)
    # mask broadcastable to [B, H, S, S]; keep at least one valid key per row
    mask = (jax.random.uniform(km, (B, 1, S, S)) > 0.3).astype(jnp.int32)
    mask = mask.at[..., 0].set(1)

    # Full path: relative embeddings + head-broadcast mask.
    out, attn = scaled_dot_product_attention(query, key_, value, rel, mask)
    out = jax.block_until_ready(out)
    attn = jax.block_until_ready(attn)
    ref_out, ref_attn = _reference(query, key_, value, rel, mask)
    assert out.shape == (B, H, S, D) and attn.shape == (B, H, S, S)
    # approx reciprocal in the softmax + accumulation-order differences
    # -> compare at 5e-3 tolerance
    assert jnp.allclose(out, ref_out, atol=5e-3, rtol=5e-3)
    assert jnp.allclose(attn, ref_attn, atol=5e-3, rtol=5e-3)

    # Specialized path: no rel, no mask (no neutral operands streamed).
    out2, attn2 = scaled_dot_product_attention(query, key_, value)
    out2 = jax.block_until_ready(out2)
    attn2 = jax.block_until_ready(attn2)
    ref_out2, ref_attn2 = _reference(query, key_, value)
    assert jnp.allclose(out2, ref_out2, atol=5e-3, rtol=5e-3)
    assert jnp.allclose(attn2, ref_attn2, atol=5e-3, rtol=5e-3)

    print("KERNEL_OK")
</pallas_src>

<mosaic_0001>
module attributes {stable_mosaic.version = 11 : i64} {
  func.func @kernel(%arg0: i32, %arg1: i32, %arg2: i32, %arg3: memref<1x1x8x32xf32, #tpu.memory_space<vmem>>, %arg4: memref<1x1x8x32xf32, #tpu.memory_space<vmem>>, %arg5: memref<1x1x8x32xf32, #tpu.memory_space<vmem>>, %arg6: memref<1x1x8x32xf32, #tpu.memory_space<vmem>>, %arg7: memref<1x1x8x8xi8, #tpu.memory_space<vmem>>, %arg8: memref<1x1x8x32xf32, #tpu.memory_space<vmem>>, %arg9: memref<1x1x8x8xf32, #tpu.memory_space<vmem>>) attributes {dimension_semantics = [#tpu.dimension_semantics<parallel>, #tpu.dimension_semantics<parallel>, #tpu.dimension_semantics<parallel>], iteration_bounds = array<i64: 2, 4, 1>, scalar_prefetch = 0 : i64, scratch_operands = 0 : i64, tpu.core_type = #tpu.core_type<tc>, window_params = [{transform_indices = @transform_0, window_bounds = array<i64: 1, 1, 8, 32>}, {transform_indices = @transform_1, window_bounds = array<i64: 1, 1, 8, 32>}, {transform_indices = @transform_2, window_bounds = array<i64: 1, 1, 8, 32>}, {transform_indices = @transform_3, window_bounds = array<i64: 1, 1, 8, 32>}, {transform_indices = @transform_4, window_bounds = array<i64: 1, 1, 8, 8>}, {transform_indices = @transform_5, window_bounds = array<i64: 1, 1, 8, 32>}, {transform_indices = @transform_6, window_bounds = array<i64: 1, 1, 8, 8>}]} {
    %c0 = arith.constant 0 : index
    %c0_0 = arith.constant 0 : index
    %c0_1 = arith.constant 0 : index
    %c0_2 = arith.constant 0 : index
    %0 = vector.load %arg3[%c0, %c0_0, %c0_1, %c0_2] : memref<1x1x8x32xf32, #tpu.memory_space<vmem>>, vector<1x1x8x32xf32>
    %1 = vector.shape_cast %0 : vector<1x1x8x32xf32> to vector<8x32xf32>
    %c0_3 = arith.constant 0 : index
    %c0_4 = arith.constant 0 : index
    %c0_5 = arith.constant 0 : index
    %c0_6 = arith.constant 0 : index
    %2 = vector.load %arg4[%c0_3, %c0_4, %c0_5, %c0_6] : memref<1x1x8x32xf32, #tpu.memory_space<vmem>>, vector<1x1x8x32xf32>
    %3 = vector.shape_cast %2 : vector<1x1x8x32xf32> to vector<8x32xf32>
    %c0_7 = arith.constant 0 : index
    %c0_8 = arith.constant 0 : index
    %c0_9 = arith.constant 0 : index
    %c0_10 = arith.constant 0 : index
    %4 = vector.load %arg5[%c0_7, %c0_8, %c0_9, %c0_10] : memref<1x1x8x32xf32, #tpu.memory_space<vmem>>, vector<1x1x8x32xf32>
    %5 = vector.shape_cast %4 : vector<1x1x8x32xf32> to vector<8x32xf32>
    %cst = arith.constant 0.176776692 : f32
    %6 = vector.broadcast %cst : f32 to vector<8x32xf32>
    %7 = arith.mulf %3, %6 : vector<8x32xf32>
    %c0_11 = arith.constant 0 : index
    %c0_12 = arith.constant 0 : index
    %c0_13 = arith.constant 0 : index
    %c0_14 = arith.constant 0 : index
    %8 = vector.load %arg6[%c0_11, %c0_12, %c0_13, %c0_14] : memref<1x1x8x32xf32, #tpu.memory_space<vmem>>, vector<1x1x8x32xf32>
    %9 = vector.shape_cast %8 : vector<1x1x8x32xf32> to vector<8x32xf32>
    %10 = arith.addf %7, %9 : vector<8x32xf32>
    %cst_15 = arith.constant dense<0.000000e+00> : vector<8x8xf32>
    %11 = tpu.matmul %1, %10, %cst_15 {dimension_numbers = #tpu.dot_dimension_numbers<[1], [1], [0], [0], [0, 0, 1, 0], [], []>, precision = #tpu.contract_precision<fp32>} : vector<8x32xf32>, vector<8x32xf32>, vector<8x8xf32> -> vector<8x8xf32>
    %c0_16 = arith.constant 0 : index
    %c0_17 = arith.constant 0 : index
    %c0_18 = arith.constant 0 : index
    %c0_19 = arith.constant 0 : index
    %12 = vector.load %arg7[%c0_16, %c0_17, %c0_18, %c0_19] : memref<1x1x8x8xi8, #tpu.memory_space<vmem>>, vector<1x1x8x8xi8>
    %13 = vector.shape_cast %12 : vector<1x1x8x8xi8> to vector<8x8xi8>
    %c0_i8 = arith.constant 0 : i8
    %14 = vector.broadcast %c0_i8 : i8 to vector<8x8xi8>
    %15 = arith.cmpi ne, %13, %14 : vector<8x8xi8>
    %cst_20 = arith.constant -1.000000e+09 : f32
    %16 = vector.broadcast %cst_20 : f32 to vector<8x8xf32>
    %17 = arith.select %15, %16, %11 : vector<8x8xi1>, vector<8x8xf32>
    %cst_21 = arith.constant dense<0xFF800000> : vector<8xf32>
    %18 = vector.multi_reduction <maximumf>, %17, %cst_21 [1] : vector<8x8xf32> to vector<8xf32>
    %19 = vector.shape_cast %18 : vector<8xf32> to vector<8x1xf32>
    %20 = vector.broadcast %19 : vector<8x1xf32> to vector<8x8xf32>
    %21 = arith.subf %17, %20 : vector<8x8xf32>
    %22 = math.exp %21 : vector<8x8xf32>
    %cst_22 = arith.constant dense<0.000000e+00> : vector<8xf32>
    %23 = vector.multi_reduction <add>, %22, %cst_22 [1] : vector<8x8xf32> to vector<8xf32>
    %24 = vector.shape_cast %23 : vector<8xf32> to vector<8x1xf32>
    %25 = tpu.reciprocal %24 {approx = true} : vector<8x1xf32> -> vector<8x1xf32>
    %26 = vector.broadcast %25 : vector<8x1xf32> to vector<8x8xf32>
    %27 = arith.mulf %22, %26 : vector<8x8xf32>
    %cst_23 = arith.constant dense<0.000000e+00> : vector<8x32xf32>
    %28 = tpu.matmul %27, %5, %cst_23 {dimension_numbers = #tpu.dot_dimension_numbers<[1], [0], [0], [1], [0, 0, 1, 1], [], []>, precision = #tpu.contract_precision<fp32>} : vector<8x8xf32>, vector<8x32xf32>, vector<8x32xf32> -> vector<8x32xf32>
    %c0_24 = arith.constant 0 : index
    %c0_25 = arith.constant 0 : index
    %c0_26 = arith.constant 0 : index
    %c0_27 = arith.constant 0 : index
    %29 = vector.load %arg9[%c0_24, %c0_25, %c0_26, %c0_27] : memref<1x1x8x8xf32, #tpu.memory_space<vmem>>, vector<1x1x8x8xf32>
    %30 = vector.shape_cast %29 : vector<1x1x8x8xf32> to vector<8x8xf32>
    %31 = vector.shape_cast %27 : vector<8x8xf32> to vector<1x1x8x8xf32>
    tpu.vector_store %arg9[%c0_24, %c0_25, %c0_26, %c0_27], %31 {strides = array<i32>} : memref<1x1x8x8xf32, #tpu.memory_space<vmem>>, vector<1x1x8x8xf32>,
    %c0_28 = arith.constant 0 : index
    %c0_29 = arith.constant 0 : index
    %c0_30 = arith.constant 0 : index
    %c0_31 = arith.constant 0 : index
    %32 = vector.load %arg8[%c0_28, %c0_29, %c0_30, %c0_31] : memref<1x1x8x32xf32, #tpu.memory_space<vmem>>, vector<1x1x8x32xf32>
    %33 = vector.shape_cast %32 : vector<1x1x8x32xf32> to vector<8x32xf32>
    %34 = vector.shape_cast %28 : vector<8x32xf32> to vector<1x1x8x32xf32>
    tpu.vector_store %arg8[%c0_28, %c0_29, %c0_30, %c0_31], %34 {strides = array<i32>} : memref<1x1x8x32xf32, #tpu.memory_space<vmem>>, vector<1x1x8x32xf32>,
    return
  }
  func.func @transform_0(%arg0: i32, %arg1: i32, %arg2: i32) -> (i32, i32, i32, i32) {
    %c0_i32 = arith.constant 0 : i32
    %c0_i32_0 = arith.constant 0 : i32
    return %arg0, %arg1, %arg2, %c0_i32 : i32, i32, i32, i32
  }
  func.func @transform_1(%arg0: i32, %arg1: i32, %arg2: i32) -> (i32, i32, i32, i32) {
    %c0_i32 = arith.constant 0 : i32
    %c0_i32_0 = arith.constant 0 : i32
    %c0_i32_1 = arith.constant 0 : i32
    return %arg0, %arg1, %c0_i32, %c0_i32_0 : i32, i32, i32, i32
  }
  func.func @transform_2(%arg0: i32, %arg1: i32, %arg2: i32) -> (i32, i32, i32, i32) {
    %c0_i32 = arith.constant 0 : i32
    %c0_i32_0 = arith.constant 0 : i32
    %c0_i32_1 = arith.constant 0 : i32
    return %arg0, %arg1, %c0_i32, %c0_i32_0 : i32, i32, i32, i32
  }
  func.func @transform_3(%arg0: i32, %arg1: i32, %arg2: i32) -> (i32, i32, i32, i32) {
    %c0_i32 = arith.constant 0 : i32
    %c0_i32_0 = arith.constant 0 : i32
    %c0_i32_1 = arith.constant 0 : i32
    return %arg0, %arg1, %c0_i32, %c0_i32_0 : i32, i32, i32, i32
  }
  func.func @transform_4(%arg0: i32, %arg1: i32, %arg2: i32) -> (i32, i32, i32, i32) {
    %c0_i32 = arith.constant 0 : i32
    %c0_i32_0 = arith.constant 0 : i32
    %c0_i32_1 = arith.constant 0 : i32
    return %arg0, %c0_i32, %arg2, %c0_i32_0 : i32, i32, i32, i32
  }
  func.func @transform_5(%arg0: i32, %arg1: i32, %arg2: i32) -> (i32, i32, i32, i32) {
    %c0_i32 = arith.constant 0 : i32
    %c0_i32_0 = arith.constant 0 : i32
    return %arg0, %arg1, %arg2, %c0_i32 : i32, i32, i32, i32
  }
  func.func @transform_6(%arg0: i32, %arg1: i32, %arg2: i32) -> (i32, i32, i32, i32) {
    %c0_i32 = arith.constant 0 : i32
    %c0_i32_0 = arith.constant 0 : i32
    return %arg0, %arg1, %arg2, %c0_i32 : i32, i32, i32, i32
  }
}

</mosaic_0001>

<llo_original>
// kernel: tpu_custom_call.1
$region0: #{tpu_custom_call.1}
  #allocation0 [shape = 'u32[]', space=smem, size = 0x4, offset = 0x4, fixed_abs, tag = 'smem constant byte address 0x4 - core index']
  #allocation1 [shape = 'u32[144,128]{1,0:T(1,128)}', space=vmem, size = 0x12000, scoped, tag = 'internal scratch']
  %s0 = inlined_call_operand.hbm [shape: f32[2,4,8,32], index: 0, kind: input, shape index: {}]
  %s1 = inlined_call_operand.hbm [shape: f32[2,4,8,32], index: 1, kind: input, shape index: {}]
  %s2 = inlined_call_operand.hbm [shape: f32[2,4,8,32], index: 2, kind: input, shape index: {}]
  %s3 = inlined_call_operand.hbm [shape: f32[2,4,8,32], index: 3, kind: input, shape index: {}]
  %s4 = inlined_call_operand.vmem [shape: s8[2,1,8,8], index: 4, kind: input, shape index: {}]
  %s5 = inlined_call_operand.hbm [shape: f32[2,4,8,32], index: 5, kind: output, shape index: {0}]
  %s6 = inlined_call_operand.hbm [shape: f32[2,4,8,8], index: 6, kind: output, shape index: {1}]
  %7 = xla_tuple %s5, %s6
  %s8 = sld [smem:[#allocation0]]
  $region77: #{tpu_custom_call.1} parent=0
    _
  %s10 = ssub.s32 1, %s8
  %s11 = scalar_select 0, %s10, %s8
  $region1: #{tpu_custom_call.1} parent=0
    #allocation2 [shape = 'u8[8192]{0}', space=vmem, size = 0x2000, scoped, tag = 'input window, operand 0']
    #allocation3 [shape = 's32[2]{0}', space=sflag, size = 0x8, scoped, tag = 'scoped memory for tpu_custom_call.1']
    #allocation4 [shape = 's32[2]{0}', space=sflag, size = 0x8, scoped, tag = 'scoped memory for tpu_custom_call.1']
    #allocation5 [shape = 'u8[8192]{0}', space=vmem, size = 0x2000, scoped, tag = 'input window, operand 1']
    #allocation6 [shape = 's32[2]{0}', space=sflag, size = 0x8, scoped, tag = 'scoped memory for tpu_custom_call.1']
    #allocation7 [shape = 'u8[8192]{0}', space=vmem, size = 0x2000, scoped, tag = 'input window, operand 2']
    #allocation8 [shape = 'u8[8192]{0}', space=vmem, size = 0x2000, scoped, tag = 'input window, operand 3']
    #allocation9 [shape = 's32[2]{0}', space=sflag, size = 0x8, scoped, tag = 'scoped memory for tpu_custom_call.1']
    #allocation10 [shape = 'u8[8192]{0}', space=vmem, size = 0x2000, scoped, tag = 'output window, operand 0']
    #allocation11 [shape = 'u8[8192]{0}', space=vmem, size = 0x2000, scoped, tag = 'output window, operand 1']
    #allocation12 [shape = 's32[2]{0}', space=sflag, size = 0x8, scoped, tag = 'scoped memory for tpu_custom_call.1']
    %12 = vsyncpa [#allocation3], 0
    %s13 = scalar_lea.sflag [#allocation3], 1
    %14 = vsyncpa %s13, 0
    %15 = vsyncpa [#allocation6], 0
    %s16 = scalar_lea.sflag [#allocation6], 1
    %17 = vsyncpa %s16, 0
    %18 = vsyncpa [#allocation9], 0
    %s19 = scalar_lea.sflag [#allocation9], 1
    %20 = vsyncpa %s19, 0
    %21 = vsyncpa [#allocation4], 0
    %s22 = scalar_lea.sflag [#allocation4], 1
    %23 = vsyncpa %s22, 0
    %24 = vsyncpa [#allocation12], 0
    %s25 = scalar_lea.sflag [#allocation12], 1
    %26 = vsyncpa %s25, 0
    loop: start=0, step=1, limit=10
    $region2: #{tpu_custom_call.1} parent=1 // loop_pre_header
      _
    $region3: #{tpu_custom_call.1} parent=1 // loop_header
      %s28 = sphi 0, %s32
      %p29 = scmp.ge.s32.totalorder %s28, 10
      %s35 = sphi 0, %s54
      %s36 = sphi 0, %s50
      %s37 = sphi 0, %s46
      %s38 = sphi 0, %s35
      %s39 = sphi 0, %s36
      %s40 = sphi 0, %s37
      %s41 = sphi 0, %s38
      %s42 = sphi 0, %s39
      %s43 = sphi 0, %s40
      %s61 = sphi 0, %s63
      %s64 = sphi 0, %s61
      %s65 = sphi 0, %s64
      %s81 = sphi 0, %s65
      %s89 = sphi 0, %s91
      %s92 = sphi 0, %s89
      %s93 = sphi 0, %s92
      %s109 = sphi 0, %s93
      %s117 = sphi 0, %s119
      %s120 = sphi 0, %s117
      %s121 = sphi 0, %s120
      %s137 = sphi 0, %s121
      %s145 = sphi 0, %s147
      %s148 = sphi 0, %s145
      %s149 = sphi 0, %s148
      %s165 = sphi 0, %s149
      %s173 = sphi 0, %s175
      %s176 = sphi 0, %s173
      %s177 = sphi 0, %s176
      %s193 = sphi 0, %s177
      %s203 = sphi 0, %s205
      %s206 = sphi 0, %s203
      %s207 = sphi 0, %s206
      %s223 = sphi 0, %s207
      %s233 = sphi 0, %s235
      %s236 = sphi 0, %s233
      %s237 = sphi 0, %s236
      %s253 = sphi 0, %s237
    $region4: #{tpu_custom_call.1} parent=1 // loop_header_branch
      %31 = sbr.rel (%p29) target = $region8
    $region5: #{tpu_custom_call.1} parent=1 // loop_body
      %s33 = ssub.s32 %s28, 1
      %s34 = ssub.s32 %s28, 2
      %s44 = sadd.s32 1, %s37
      %p45 = scmp.ge.s32.totalorder %s44, 1
      %s46 = scalar_select %p45, 0, %s44
      %s47 = sadd.s32 1, %s36
      %s48 = scalar_select %p45, %s47, %s36
      %p49 = scmp.ge.s32.totalorder %s48, 4
      %s50 = scalar_select %p49, 0, %s48
      %s51 = sadd.s32 1, %s35
      %s52 = scalar_select %p49, %s51, %s35
      %p53 = scmp.ge.s32.totalorder %s52, 2
      %s54 = scalar_select %p53, 0, %s52
      %s55 = ssub.s32 %s35, %s54
      %s56 = ssub.s32 %s36, %s50
      %s57 = sor.u32 %s55, %s56
      %s58 = ssub.s32 %s37, %s46
      %s59 = sor.u32 %s57, %s58
      %p60 = scmp.eq.s32.totalorder %s59, 0
      %s62 = sadd.s32 %s61, 1
      %s63 = scalar_select %p60, %s61, %s62
      %p66 = pneg %p60
      %p67 = scmp.eq.s32.totalorder %s28, 7
      %p68 = por %p66, %p67
      %p69 = scmp.ne.s32.totalorder %s61, %s64
      %p70 = scmp.eq.s32.totalorder %s28, 0
      %p71 = por %p69, %p70
      %p72 = scmp.ne.s32.totalorder %s61, %s64
      %p73 = scmp.eq.s32.totalorder %s33, 7
      %p74 = por %p72, %p73
      %p75 = scmp.ne.s32.totalorder %s64, %s65
      %p76 = scmp.eq.s32.totalorder %s33, 0
      %p77 = por %p75, %p76
      %p78 = scmp.ne.s32.totalorder %s64, %s65
      %p79 = scmp.eq.s32.totalorder %s34, 7
      %p80 = por %p78, %p79
      %p82 = scmp.ne.s32.totalorder %s65, %s81
      %p83 = scmp.eq.s32.totalorder %s34, 0
      %p84 = por %p82, %p83
      %s85 = ssub.s32 %s35, %s54
      %s86 = ssub.s32 %s36, %s50
      %s87 = sor.u32 %s85, %s86
      %p88 = scmp.eq.s32.totalorder %s87, 0
      %s90 = sadd.s32 %s89, 1
      %s91 = scalar_select %p88, %s89, %s90
      %p94 = pneg %p88
      %p95 = scmp.eq.s32.totalorder %s28, 7
      %p96 = por %p94, %p95
      %p97 = scmp.ne.s32.totalorder %s89, %s92
      %p98 = scmp.eq.s32.totalorder %s28, 0
      %p99 = por %p97, %p98
      %p100 = scmp.ne.s32.totalorder %s89, %s92
      %p101 = scmp.eq.s32.totalorder %s33, 7
      %p102 = por %p100, %p101
      %p103 = scmp.ne.s32.totalorder %s92, %s93
      %p104 = scmp.eq.s32.totalorder %s33, 0
      %p105 = por %p103, %p104
      %p106 = scmp.ne.s32.totalorder %s92, %s93
      %p107 = scmp.eq.s32.totalorder %s34, 7
      %p108 = por %p106, %p107
      %p110 = scmp.ne.s32.totalorder %s93, %s109
      %p111 = scmp.eq.s32.totalorder %s34, 0
      %p112 = por %p110, %p111
      %s113 = ssub.s32 %s35, %s54
      %s114 = ssub.s32 %s36, %s50
      %s115 = sor.u32 %s113, %s114
      %p116 = scmp.eq.s32.totalorder %s115, 0
      %s118 = sadd.s32 %s117, 1
      %s119 = scalar_select %p116, %s117, %s118
      %p122 = pneg %p116
      %p123 = scmp.eq.s32.totalorder %s28, 7
      %p124 = por %p122, %p123
      %p125 = scmp.ne.s32.totalorder %s117, %s120
      %p126 = scmp.eq.s32.totalorder %s28, 0
      %p127 = por %p125, %p126
      %p128 = scmp.ne.s32.totalorder %s117, %s120
      %p129 = scmp.eq.s32.totalorder %s33, 7
      %p130 = por %p128, %p129
      %p131 = scmp.ne.s32.totalorder %s120, %s121
      %p132 = scmp.eq.s32.totalorder %s33, 0
      %p133 = por %p131, %p132
      %p134 = scmp.ne.s32.totalorder %s120, %s121
      %p135 = scmp.eq.s32.totalorder %s34, 7
      %p136 = por %p134, %p135
      %p138 = scmp.ne.s32.totalorder %s121, %s137
      %p139 = scmp.eq.s32.totalorder %s34, 0
      %p140 = por %p138, %p139
      %s141 = ssub.s32 %s35, %s54
      %s142 = ssub.s32 %s36, %s50
      %s143 = sor.u32 %s141, %s142
      %p144 = scmp.eq.s32.totalorder %s143, 0
      %s146 = sadd.s32 %s145, 1
      %s147 = scalar_select %p144, %s145, %s146
      %p150 = pneg %p144
      %p151 = scmp.eq.s32.totalorder %s28, 7
      %p152 = por %p150, %p151
      %p153 = scmp.ne.s32.totalorder %s145, %s148
      %p154 = scmp.eq.s32.totalorder %s28, 0
      %p155 = por %p153, %p154
      %p156 = scmp.ne.s32.totalorder %s145, %s148
      %p157 = scmp.eq.s32.totalorder %s33, 7
      %p158 = por %p156, %p157
      %p159 = scmp.ne.s32.totalorder %s148, %s149
      %p160 = scmp.eq.s32.totalorder %s33, 0
      %p161 = por %p159, %p160
      %p162 = scmp.ne.s32.totalorder %s148, %s149
      %p163 = scmp.eq.s32.totalorder %s34, 7
      %p164 = por %p162, %p163
      %p166 = scmp.ne.s32.totalorder %s149, %s165
      %p167 = scmp.eq.s32.totalorder %s34, 0
      %p168 = por %p166, %p167
      %s169 = ssub.s32 %s35, %s54
      %s170 = ssub.s32 %s37, %s46
      %s171 = sor.u32 %s169, %s170
      %p172 = scmp.eq.s32.totalorder %s171, 0
      %s174 = sadd.s32 %s173, 1
      %s175 = scalar_select %p172, %s173, %s174
      %p178 = pneg %p172
      %p179 = scmp.eq.s32.totalorder %s28, 7
      %p180 = por %p178, %p179
      %p181 = scmp.ne.s32.totalorder %s173, %s176
      %p182 = scmp.eq.s32.totalorder %s28, 0
      %p183 = por %p181, %p182
      %p184 = scmp.ne.s32.totalorder %s173, %s176
      %p185 = scmp.eq.s32.totalorder %s33, 7
      %p186 = por %p184, %p185
      %p187 = scmp.ne.s32.totalorder %s176, %s177
      %p188 = scmp.eq.s32.totalorder %s33, 0
      %p189 = por %p187, %p188
      %p190 = scmp.ne.s32.totalorder %s176, %s177
      %p191 = scmp.eq.s32.totalorder %s34, 7
      %p192 = por %p190, %p191
      %p194 = scmp.ne.s32.totalorder %s177, %s193
      %p195 = scmp.eq.s32.totalorder %s34, 0
      %p196 = por %p194, %p195
      %s197 = ssub.s32 %s35, %s54
      %s198 = ssub.s32 %s36, %s50
      %s199 = sor.u32 %s197, %s198
      %s200 = ssub.s32 %s37, %s46
      %s201 = sor.u32 %s199, %s200
      %p202 = scmp.eq.s32.totalorder %s201, 0
      %s204 = sadd.s32 %s203, 1
      %s205 = scalar_select %p202, %s203, %s204
      %p208 = pneg %p202
      %p209 = scmp.eq.s32.totalorder %s28, 7
      %p210 = por %p208, %p209
      %p211 = scmp.ne.s32.totalorder %s203, %s206
      %p212 = scmp.eq.s32.totalorder %s28, 0
      %p213 = por %p211, %p212
      %p214 = scmp.ne.s32.totalorder %s203, %s206
      %p215 = scmp.eq.s32.totalorder %s33, 7
      %p216 = por %p214, %p215
      %p217 = scmp.ne.s32.totalorder %s206, %s207
      %p218 = scmp.eq.s32.totalorder %s33, 0
      %p219 = por %p217, %p218
      %p220 = scmp.ne.s32.totalorder %s206, %s207
      %p221 = scmp.eq.s32.totalorder %s34, 7
      %p222 = por %p220, %p221
      %p224 = scmp.ne.s32.totalorder %s207, %s223
      %p225 = scmp.eq.s32.totalorder %s34, 0
      %p226 = por %p224, %p225
      %s227 = ssub.s32 %s35, %s54
      %s228 = ssub.s32 %s36, %s50
      %s229 = sor.u32 %s227, %s228
      %s230 = ssub.s32 %s37, %s46
      %s231 = sor.u32 %s229, %s230
      %p232 = scmp.eq.s32.totalorder %s231, 0
      %s234 = sadd.s32 %s233, 1
      %s235 = scalar_select %p232, %s233, %s234
      %p238 = pneg %p232
      %p239 = scmp.eq.s32.totalorder %s28, 7
      %p240 = por %p238, %p239
      %p241 = scmp.ne.s32.totalorder %s233, %s236
      %p242 = scmp.eq.s32.totalorder %s28, 0
      %p243 = por %p241, %p242
      %p244 = scmp.ne.s32.totalorder %s233, %s236
      %p245 = scmp.eq.s32.totalorder %s33, 7
      %p246 = por %p244, %p245
      %p247 = scmp.ne.s32.totalorder %s236, %s237
      %p248 = scmp.eq.s32.totalorder %s33, 0
      %p249 = por %p247, %p248
      %p250 = scmp.ne.s32.totalorder %s236, %s237
      %p251 = scmp.eq.s32.totalorder %s34, 7
      %p252 = por %p250, %p251
      %p254 = scmp.ne.s32.totalorder %s237, %s253
      %p255 = scmp.eq.s32.totalorder %s34, 0
      %p256 = por %p254, %p255
      %p257 = scmp.le.s32.totalorder 1, %s28
      %p258 = scmp.lt.s32.totalorder %s28, 9
      %p259 = pnand %p257, %p258
      %p260 = pneg %p259
      // Predicated region
      $region9: #{tpu_custom_call.1} parent=5 // pred_check
        _
      $region10: #{tpu_custom_call.1} parent=5 // pred_check_branch
        %262 = sbr.rel (%p259) target = $region12
      $region11: #{tpu_custom_call.1} parent=5 // pred_region
        %s263 = ssub.s32 %s28, 1
      $region12: #{tpu_custom_call.1} parent=5 // pred_fallthru
        _
      %p264 = scmp.lt.s32.totalorder %s28, 8
      // Predicated region
      $region13: #{tpu_custom_call.1} parent=5 // pred_check
        %p265 = pneg %p264
      $region14: #{tpu_custom_call.1} parent=5 // pred_check_branch
        %267 = sbr.rel (%p265) target = $region16
      $region15: #{tpu_custom_call.1} parent=5 // pred_region
        // Predicated region
        $region17: #{tpu_custom_call.1} parent=15 // pred_check
          %p268 = pneg %p71
        $region18: #{tpu_custom_call.1} parent=15 // pred_check_branch
          %270 = sbr.rel (%p268) target = $region20
        $region19: #{tpu_custom_call.1} parent=15 // pred_region
          %s271 = sand.u32 %s61, 1
          %s272 = scalar_lea.sflag [#allocation3], %s271
          %s273 = sand.u32 %s61, 1
          %s274 = smul.addr %s273, 8
          %s275 = scalar_lea.vmem [#allocation2], %s274
          %s277 = ssub.s32 128, 128
          %278 = vsyncadd %s272, %s277
          %s279 = sadd.s32 %s37, %s36
          %s280 = smul.addr %s35, 4
          %s281 = sadd.s32 %s279, %s280
          %s282 = smul.addr %s281, 128
          %s283 = scalar_lea.hbm %s0, %s282
          %s285 = sshll.u32 %s275, 4
          %s286 = int_to_ptr.vmem [resolvable:$true] %s285
          %288 = dma.hbm_to_vmem [thread:$0]  %s283, 128, %s286, %s272
        $region20: #{tpu_custom_call.1} parent=15 // pred_fallthru
          _
        // Predicated region
        $region21: #{tpu_custom_call.1} parent=15 // pred_check
          %p289 = pneg %p99
        $region22: #{tpu_custom_call.1} parent=15 // pred_check_branch
          %291 = sbr.rel (%p289) target = $region24
        $region23: #{tpu_custom_call.1} parent=15 // pred_region
          %s292 = sand.u32 %s28, 1
          %s293 = scalar_lea.sflag [#allocation6], %s292
          %s294 = sand.u32 %s89, 1
          %s295 = smul.addr %s294, 8
          %s296 = scalar_lea.vmem [#allocation5], %s295
          %s298 = ssub.s32 128, 128
          %299 = vsyncadd %s293, %s298
          %s300 = smul.addr %s35, 4
          %s301 = sadd.s32 %s36, %s300
          %s302 = smul.addr %s301, 128
          %s303 = scalar_lea.hbm %s1, %s302
          %s305 = sshll.u32 %s296, 4
          %s306 = int_to_ptr.vmem [resolvable:$true] %s305
          %308 = dma.hbm_to_vmem [thread:$0]  %s303, 128, %s306, %s293
        $region24: #{tpu_custom_call.1} parent=15 // pred_fallthru
          _
        // Predicated region
        $region25: #{tpu_custom_call.1} parent=15 // pred_check
          %p309 = pneg %p127
        $region26: #{tpu_custom_call.1} parent=15 // pred_check_branch
          %311 = sbr.rel (%p309) target = $region28
        $region27: #{tpu_custom_call.1} parent=15 // pred_region
          %s312 = sand.u32 %s28, 1
          %s313 = scalar_lea.sflag [#allocation6], %s312
          %s314 = sand.u32 %s117, 1
          %s315 = smul.addr %s314, 8
          %s316 = scalar_lea.vmem [#allocation7], %s315
          %s318 = ssub.s32 128, 128
          %319 = vsyncadd %s313, %s318
          %s320 = smul.addr %s35, 4
          %s321 = sadd.s32 %s36, %s320
          %s322 = smul.addr %s321, 128
          %s323 = scalar_lea.hbm %s2, %s322
          %s325 = sshll.u32 %s316, 4
          %s326 = int_to_ptr.vmem [resolvable:$true] %s325
          %328 = dma.hbm_to_vmem [thread:$0]  %s323, 128, %s326, %s313
        $region28: #{tpu_custom_call.1} parent=15 // pred_fallthru
          _
        // Predicated region
        $region29: #{tpu_custom_call.1} parent=15 // pred_check
          %p329 = pneg %p155
        $region30: #{tpu_custom_call.1} parent=15 // pred_check_branch
          %331 = sbr.rel (%p329) target = $region32
        $region31: #{tpu_custom_call.1} parent=15 // pred_region
          %s332 = sand.u32 %s145, 1
          %s333 = scalar_lea.sflag [#allocation9], %s332
          %s334 = sand.u32 %s145, 1
          %s335 = smul.addr %s334, 8
          %s336 = scalar_lea.vmem [#allocation8], %s335
          %s338 = ssub.s32 128, 128
          %339 = vsyncadd %s333, %s338
          %s340 = smul.addr %s35, 4
          %s341 = sadd.s32 %s36, %s340
          %s342 = smul.addr %s341, 128
          %s343 = scalar_lea.hbm %s3, %s342
          %s345 = sshll.u32 %s336, 4
          %s346 = int_to_ptr.vmem [resolvable:$true] %s345
          %348 = dma.hbm_to_vmem [thread:$0]  %s343, 128, %s346, %s333
        $region32: #{tpu_custom_call.1} parent=15 // pred_fallthru
          _
        // Predicated region
        $region33: #{tpu_custom_call.1} parent=15 // pred_check
          %p349 = pneg %p183
        $region34: #{tpu_custom_call.1} parent=15 // pred_check_branch
          %351 = sbr.rel (%p349) target = $region36
        $region35: #{tpu_custom_call.1} parent=15 // pred_region
          %p352 = scmp.lt.s32.totalorder %s35, 1
          %s353 = scalar_select %p352, %s35, 1
          %p354 = scmp.lt.s32.totalorder %s37, 0
          %s355 = scalar_select %p354, %s37, 0
          %s356 = sadd.s32 %s355, %s353
          %s357 = smul.addr %s356, 2
          %s358 = scalar_lea.vmem %s4, %s357
        $region36: #{tpu_custom_call.1} parent=15 // pred_fallthru
          _
      $region16: #{tpu_custom_call.1} parent=5 // pred_fallthru
        _
      %p359 = scmp.le.s32.totalorder 1, %s28
      %p360 = scmp.lt.s32.totalorder %s28, 9
      %p361 = pnand %p359, %p360
      %p362 = pneg %p361
      // Predicated region
      $region37: #{tpu_custom_call.1} parent=5 // pred_check
        _
      $region38: #{tpu_custom_call.1} parent=5 // pred_check_branch
        %364 = sbr.rel (%p361) target = $region40
      $region39: #{tpu_custom_call.1} parent=5 // pred_region
        %s365 = ssub.s32 %s28, 1
        %s366 = sand.u32 %s64, 1
        %s367 = scalar_lea.sflag [#allocation3], %s366
        %s368 = sand.u32 %s64, 1
        %s369 = smul.addr %s368, 8
        %s370 = scalar_lea.vmem [#allocation2], %s369
        // Predicated region
        $region41: #{tpu_custom_call.1} parent=39 // pred_check
          %p371 = pneg %p77
        $region42: #{tpu_custom_call.1} parent=39 // pred_check_branch
          %373 = sbr.rel (%p371) target = $region44
        $region43: #{tpu_custom_call.1} parent=39 // pred_region
          %374 = dma.done %s367, 128
        $region44: #{tpu_custom_call.1} parent=39 // pred_fallthru
          _
        %s375 = sand.u32 %s33, 1
        %s376 = scalar_lea.sflag [#allocation6], %s375
        %s377 = sand.u32 %s92, 1
        %s378 = smul.addr %s377, 8
        %s379 = scalar_lea.vmem [#allocation5], %s378
        // Predicated region
        $region45: #{tpu_custom_call.1} parent=39 // pred_check
          %p380 = pneg %p105
        $region46: #{tpu_custom_call.1} parent=39 // pred_check_branch
          %382 = sbr.rel (%p380) target = $region48
        $region47: #{tpu_custom_call.1} parent=39 // pred_region
          %383 = dma.done %s376, 128
        $region48: #{tpu_custom_call.1} parent=39 // pred_fallthru
          _
        %s384 = sand.u32 %s33, 1
        %s385 = scalar_lea.sflag [#allocation6], %s384
        %s386 = sand.u32 %s120, 1
        %s387 = smul.addr %s386, 8
        %s388 = scalar_lea.vmem [#allocation7], %s387
        // Predicated region
        $region49: #{tpu_custom_call.1} parent=39 // pred_check
          %p389 = pneg %p133
        $region50: #{tpu_custom_call.1} parent=39 // pred_check_branch
          %391 = sbr.rel (%p389) target = $region52
        $region51: #{tpu_custom_call.1} parent=39 // pred_region
          %392 = dma.done %s385, 128
        $region52: #{tpu_custom_call.1} parent=39 // pred_fallthru
          _
        %s393 = sand.u32 %s148, 1
        %s394 = scalar_lea.sflag [#allocation9], %s393
        %s395 = sand.u32 %s148, 1
        %s396 = smul.addr %s395, 8
        %s397 = scalar_lea.vmem [#allocation8], %s396
        // Predicated region
        $region53: #{tpu_custom_call.1} parent=39 // pred_check
          %p398 = pneg %p161
        $region54: #{tpu_custom_call.1} parent=39 // pred_check_branch
          %400 = sbr.rel (%p398) target = $region56
        $region55: #{tpu_custom_call.1} parent=39 // pred_region
          %401 = dma.done %s394, 128
        $region56: #{tpu_custom_call.1} parent=39 // pred_fallthru
          _
        %s402 = sand.u32 %s64, 1
        %s403 = scalar_lea.sflag [#allocation3], %s402
        %s404 = sand.u32 %s64, 1
        %s405 = smul.addr %s404, 8
        %s406 = scalar_lea.vmem [#allocation2], %s405
        %p407 = pneg %p77
        %p408 = pneg %p74
        %s409 = sand.u32 %s33, 1
        %s410 = scalar_lea.sflag [#allocation6], %s409
        %s411 = sand.u32 %s92, 1
        %s412 = smul.addr %s411, 8
        %s413 = scalar_lea.vmem [#allocation5], %s412
        %p414 = pneg %p105
        %p415 = pneg %p102
        %s416 = sand.u32 %s33, 1
        %s417 = scalar_lea.sflag [#allocation6], %s416
        %s418 = sand.u32 %s120, 1
        %s419 = smul.addr %s418, 8
        %s420 = scalar_lea.vmem [#allocation7], %s419
        %p421 = pneg %p133
        %p422 = pneg %p130
        %s423 = sand.u32 %s148, 1
        %s424 = scalar_lea.sflag [#allocation9], %s423
        %s425 = sand.u32 %s148, 1
        %s426 = smul.addr %s425, 8
        %s427 = scalar_lea.vmem [#allocation8], %s426
        %p428 = pneg %p161
        %p429 = pneg %p158
        %p430 = scmp.lt.s32.totalorder %s38, 1
        %s431 = scalar_select %p430, %s38, 1
        %p432 = scmp.lt.s32.totalorder %s40, 0
        %s433 = scalar_select %p432, %s40, 0
        %s434 = sadd.s32 %s433, %s431
        %s435 = smul.addr %s434, 2
        %s436 = scalar_lea.vmem %s4, %s435
        %p437 = pneg %p189
        %p438 = pneg %p186
        %p439 = pneg %p219
        %p440 = pneg %p216
        %s441 = sand.u32 %s206, 1
        %s442 = scalar_lea.sflag [#allocation4], %s441
        %s443 = sand.u32 %s206, 1
        %s444 = smul.addr %s443, 8
        %s445 = scalar_lea.vmem [#allocation10], %s444
        %p446 = pneg %p249
        %p447 = pneg %p246
        %s448 = sand.u32 %s236, 1
        %s449 = scalar_lea.sflag [#allocation12], %s448
        %s450 = sand.u32 %s236, 1
        %s451 = smul.addr %s450, 8
        %s452 = scalar_lea.vmem [#allocation11], %s451
        %p453 = scmp.lt.s32.totalorder %s38, 1
        %s454 = scalar_select %p453, %s38, 1
        %p455 = scmp.lt.s32.totalorder %s40, 0
        %s456 = scalar_select %p455, %s40, 0
        %s457 = sadd.s32 %s456, %s454
        %s458 = smul.addr %s457, 2
        %s459 = scalar_lea.vmem %s4, %s458
        %v462 = vld [vmem:[%s370] sm:$0xff]
        %v463 = vld [vmem:[%s379] sm:$0xff]
        %v464 = vld [vmem:[%s388] sm:$0xff]
        %v465 = vmul.f32 %v463, 0.17677669
        %v466 = vld [vmem:[%s397] sm:$0xff]
        %v467 = vadd.f32 %v465, %v466
        %vm468 = vcmask 261120
        %v470 = vsel %vm468, %v462, 0
        %v473 = vsel %vm468, %v467, 0
        %475 = vmatprep.subr.mxu0 0.0
        %v476 = vand.u32 %v473, 4294901760
        %477 = vmatpush1.xpose.msra.mxu0 %v476
        %478 = vmatprep.subr.mxu0 0.0
        %479 = vmatpush1.xpose.msra.mxu0 0.0
        %480 = vmatprep.subr.mxu0 0.0
        %481 = vmatpush1.xpose.msra.mxu0 0.0
        %482 = vmatprep.subr.mxu0 0.0
        %483 = vmatpush1.xpose.msra.mxu0 0.0
        %484 = vmatprep.subr.mxu0 0.0
        %485 = vmatpush1.xpose.msra.mxu0 0.0
        %486 = vmatprep.subr.mxu0 0.0
        %487 = vmatpush1.xpose.msra.mxu0 0.0
        %488 = vmatprep.subr.mxu0 0.0
        %489 = vmatpush1.xpose.msra.mxu0 0.0
        %490 = vmatprep.subr.mxu0 0.0
        %491 = vmatpush1.xpose.msra.mxu0 0.0
        %492 = vmatprep.subr.mxu0 0.0
        %493 = vmatpush1.xpose.msra.mxu0 0.0
        %494 = vmatprep.subr.mxu0 0.0
        %495 = vmatpush1.xpose.msra.mxu0 0.0
        %496 = vmatprep.subr.mxu0 0.0
        %497 = vmatpush1.xpose.msra.mxu0 0.0
        %498 = vmatprep.subr.mxu0 0.0
        %499 = vmatpush1.xpose.msra.mxu0 0.0
        %500 = vmatprep.subr.mxu0 0.0
        %501 = vmatpush1.xpose.msra.mxu0 0.0
        %502 = vmatprep.subr.mxu0 0.0
        %503 = vmatpush1.xpose.msra.mxu0 0.0
        %504 = vmatprep.subr.mxu0 0.0
        %505 = vmatpush1.xpose.msra.mxu0 0.0
        %506 = vmatprep.subr.mxu0 0.0
        %507 = vmatpush1.xpose.msra.mxu0 0.0
        %508 = vmatprep.subr.mxu0 0.0
        %509 = vmatpush1.xpose.msra.mxu0 0.0
        %510 = vmatprep.subr.mxu0 0.0
        %511 = vmatpush1.xpose.msra.mxu0 0.0
        %512 = vmatprep.subr.mxu0 0.0
        %513 = vmatpush1.xpose.msra.mxu0 0.0
        %514 = vmatprep.subr.mxu0 0.0
        %515 = vmatpush1.xpose.msra.mxu0 0.0
        %516 = vmatprep.subr.mxu0 0.0
        %517 = vmatpush1.xpose.msra.mxu0 0.0
        %518 = vmatprep.subr.mxu0 0.0
        %519 = vmatpush1.xpose.msra.mxu0 0.0
        %520 = vmatprep.subr.mxu0 0.0
        %521 = vmatpush1.xpose.msra.mxu0 0.0
        %522 = vmatprep.subr.mxu0 0.0
        %523 = vmatpush1.xpose.msra.mxu0 0.0
        %524 = vmatprep.subr.mxu0 0.0
        %525 = vmatpush1.xpose.msra.mxu0 0.0
        %526 = vmatprep.subr.mxu0 0.0
        %527 = vmatpush1.xpose.msra.mxu0 0.0
        %528 = vmatprep.subr.mxu0 0.0
        %529 = vmatpush1.xpose.msra.mxu0 0.0
        %530 = vmatprep.subr.mxu0 0.0
        %531 = vmatpush1.xpose.msra.mxu0 0.0
        %532 = vmatprep.subr.mxu0 0.0
        %533 = vmatpush1.xpose.msra.mxu0 0.0
        %534 = vmatprep.subr.mxu0 0.0
        %535 = vmatpush1.xpose.msra.mxu0 0.0
        %536 = vmatprep.subr.mxu0 0.0
        %537 = vmatpush1.xpose.msra.mxu0 0.0
        %538 = vmatprep.subr.mxu0 0.0
        %539 = vmatpush1.xpose.msra.mxu0 0.0
        %540 = vmatprep.mubr.f32.mxu0 0.0
        %v541 = vand.u32 %v470, 4294901760
        %v542 = vsub.f32 %v470, %v541
        %v543 = vand.u32 %v542, 4294901760
        %v544 = vsub.f32 %v542, %v543
        %v545 = vand.u32 %v544, 4294901760
        %546 = vmatmul.mubr.f32.gmra.mrb[0].mxu0 %v545
        %v547 = vpop.f32.mrb[0].mxu0
        %v548 = vadd.f32 0.0, %v547
        %v549 = vpop.f32.mrb[0].mxu0
        %550 = vdwg.mxu0
        %551 = vmatprep.subr.mxu0 0.0
        %v552 = vand.u32 %v473, 4294901760
        %v553 = vsub.f32 %v473, %v552
        %v554 = vand.u32 %v553, 4294901760
        %v555 = vsub.f32 %v553, %v554
        %v556 = vand.u32 %v555, 4294901760
        %557 = vmatpush1.xpose.msra.mxu0 %v556
        %558 = vmatprep.subr.mxu0 0.0
        %559 = vmatpush1.xpose.msra.mxu0 0.0
        %560 = vmatprep.subr.mxu0 0.0
        %561 = vmatpush1.xpose.msra.mxu0 0.0
        %562 = vmatprep.subr.mxu0 0.0
        %563 = vmatpush1.xpose.msra.mxu0 0.0
        %564 = vmatprep.subr.mxu0 0.0
        %565 = vmatpush1.xpose.msra.mxu0 0.0
        %566 = vmatprep.subr.mxu0 0.0
        %567 = vmatpush1.xpose.msra.mxu0 0.0
        %568 = vmatprep.subr.mxu0 0.0
        %569 = vmatpush1.xpose.msra.mxu0 0.0
        %570 = vmatprep.subr.mxu0 0.0
        %571 = vmatpush1.xpose.msra.mxu0 0.0
        %572 = vmatprep.subr.mxu0 0.0
        %573 = vmatpush1.xpose.msra.mxu0 0.0
        %574 = vmatprep.subr.mxu0 0.0
        %575 = vmatpush1.xpose.msra.mxu0 0.0
        %576 = vmatprep.subr.mxu0 0.0
        %577 = vmatpush1.xpose.msra.mxu0 0.0
        %578 = vmatprep.subr.mxu0 0.0
        %579 = vmatpush1.xpose.msra.mxu0 0.0
        %580 = vmatprep.subr.mxu0 0.0
        %581 = vmatpush1.xpose.msra.mxu0 0.0
        %582 = vmatprep.subr.mxu0 0.0
        %583 = vmatpush1.xpose.msra.mxu0 0.0
        %584 = vmatprep.subr.mxu0 0.0
        %585 = vmatpush1.xpose.msra.mxu0 0.0
        %586 = vmatprep.subr.mxu0 0.0
        %587 = vmatpush1.xpose.msra.mxu0 0.0
        %588 = vmatprep.subr.mxu0 0.0
        %589 = vmatpush1.xpose.msra.mxu0 0.0
        %590 = vmatprep.subr.mxu0 0.0
        %591 = vmatpush1.xpose.msra.mxu0 0.0
        %592 = vmatprep.subr.mxu0 0.0
        %593 = vmatpush1.xpose.msra.mxu0 0.0
        %594 = vmatprep.subr.mxu0 0.0
        %595 = vmatpush1.xpose.msra.mxu0 0.0
        %596 = vmatprep.subr.mxu0 0.0
        %597 = vmatpush1.xpose.msra.mxu0 0.0
        %598 = vmatprep.subr.mxu0 0.0
        %599 = vmatpush1.xpose.msra.mxu0 0.0
        %600 = vmatprep.subr.mxu0 0.0
        %601 = vmatpush1.xpose.msra.mxu0 0.0
        %602 = vmatprep.subr.mxu0 0.0
        %603 = vmatpush1.xpose.msra.mxu0 0.0
        %604 = vmatprep.subr.mxu0 0.0
        %605 = vmatpush1.xpose.msra.mxu0 0.0
        %606 = vmatprep.subr.mxu0 0.0
        %607 = vmatpush1.xpose.msra.mxu0 0.0
        %608 = vmatprep.subr.mxu0 0.0
        %609 = vmatpush1.xpose.msra.mxu0 0.0
        %610 = vmatprep.subr.mxu0 0.0
        %611 = vmatpush1.xpose.msra.mxu0 0.0
        %612 = vmatprep.subr.mxu0 0.0
        %613 = vmatpush1.xpose.msra.mxu0 0.0
        %614 = vmatprep.subr.mxu0 0.0
        %615 = vmatpush1.xpose.msra.mxu0 0.0
        %616 = vmatprep.subr.mxu0 0.0
        %617 = vmatpush1.xpose.msra.mxu0 0.0
        %618 = vmatprep.subr.mxu0 0.0
        %619 = vmatpush1.xpose.msra.mxu0 0.0
        %620 = vmatprep.mubr.f32.mxu0 0.0
        %v621 = vand.u32 %v470, 4294901760
        %622 = vmatmul.mubr.f32.gmra.mrb[0].mxu0 %v621
        %v623 = vpop.f32.mrb[0].mxu0
        %v624 = vadd.f32 %v548, %v623
        %v625 = vpop.f32.mrb[0].mxu0
        %626 = vdwg.mxu0
        %627 = vmatprep.subr.mxu0 0.0
        %v628 = vand.u32 %v473, 4294901760
        %v629 = vsub.f32 %v473, %v628
        %630 = vmatpush1.xpose.msra.mxu0 %v629
        %631 = vmatprep.subr.mxu0 0.0
        %632 = vmatpush1.xpose.msra.mxu0 0.0
        %633 = vmatprep.subr.mxu0 0.0
        %634 = vmatpush1.xpose.msra.mxu0 0.0
        %635 = vmatprep.subr.mxu0 0.0
        %636 = vmatpush1.xpose.msra.mxu0 0.0
        %637 = vmatprep.subr.mxu0 0.0
        %638 = vmatpush1.xpose.msra.mxu0 0.0
        %639 = vmatprep.subr.mxu0 0.0
        %640 = vmatpush1.xpose.msra.mxu0 0.0
        %641 = vmatprep.subr.mxu0 0.0
        %642 = vmatpush1.xpose.msra.mxu0 0.0
        %643 = vmatprep.subr.mxu0 0.0
        %644 = vmatpush1.xpose.msra.mxu0 0.0
        %645 = vmatprep.subr.mxu0 0.0
        %646 = vmatpush1.xpose.msra.mxu0 0.0
        %647 = vmatprep.subr.mxu0 0.0
        %648 = vmatpush1.xpose.msra.mxu0 0.0
        %649 = vmatprep.subr.mxu0 0.0
        %650 = vmatpush1.xpose.msra.mxu0 0.0
        %651 = vmatprep.subr.mxu0 0.0
        %652 = vmatpush1.xpose.msra.mxu0 0.0
        %653 = vmatprep.subr.mxu0 0.0
        %654 = vmatpush1.xpose.msra.mxu0 0.0
        %655 = vmatprep.subr.mxu0 0.0
        %656 = vmatpush1.xpose.msra.mxu0 0.0
        %657 = vmatprep.subr.mxu0 0.0
        %658 = vmatpush1.xpose.msra.mxu0 0.0
        %659 = vmatprep.subr.mxu0 0.0
        %660 = vmatpush1.xpose.msra.mxu0 0.0
        %661 = vmatprep.subr.mxu0 0.0
        %662 = vmatpush1.xpose.msra.mxu0 0.0
        %663 = vmatprep.subr.mxu0 0.0
        %664 = vmatpush1.xpose.msra.mxu0 0.0
        %665 = vmatprep.subr.mxu0 0.0
        %666 = vmatpush1.xpose.msra.mxu0 0.0
        %667 = vmatprep.subr.mxu0 0.0
        %668 = vmatpush1.xpose.msra.mxu0 0.0
        %669 = vmatprep.subr.mxu0 0.0
        %670 = vmatpush1.xpose.msra.mxu0 0.0
        %671 = vmatprep.subr.mxu0 0.0
        %672 = vmatpush1.xpose.msra.mxu0 0.0
        %673 = vmatprep.subr.mxu0 0.0
        %674 = vmatpush1.xpose.msra.mxu0 0.0
        %675 = vmatprep.subr.mxu0 0.0
        %676 = vmatpush1.xpose.msra.mxu0 0.0
        %677 = vmatprep.subr.mxu0 0.0
        %678 = vmatpush1.xpose.msra.mxu0 0.0
        %679 = vmatprep.subr.mxu0 0.0
        %680 = vmatpush1.xpose.msra.mxu0 0.0
        %681 = vmatprep.subr.mxu0 0.0
        %682 = vmatpush1.xpose.msra.mxu0 0.0
        %683 = vmatprep.subr.mxu0 0.0
        %684 = vmatpush1.xpose.msra.mxu0 0.0
        %685 = vmatprep.subr.mxu0 0.0
        %686 = vmatpush1.xpose.msra.mxu0 0.0
        %687 = vmatprep.subr.mxu0 0.0
        %688 = vmatpush1.xpose.msra.mxu0 0.0
        %689 = vmatprep.subr.mxu0 0.0
        %690 = vmatpush1.xpose.msra.mxu0 0.0
        %691 = vmatprep.subr.mxu0 0.0
        %692 = vmatpush1.xpose.msra.mxu0 0.0
        %693 = vmatprep.mubr.f32.mxu0 0.0
        %v694 = vand.u32 %v470, 4294901760
        %v695 = vsub.f32 %v470, %v694
        %696 = vmatmul.mubr.f32.gmra.mrb[0].mxu0 %v695
        %v697 = vpop.f32.mrb[0].mxu0
        %v698 = vadd.f32 %v624, %v697
        %v699 = vpop.f32.mrb[0].mxu0
        %700 = vdwg.mxu0
        %701 = vmatprep.subr.mxu0 0.0
        %v702 = vand.u32 %v473, 4294901760
        %703 = vmatpush1.xpose.msra.mxu0 %v702
        %704 = vmatprep.subr.mxu0 0.0
        %705 = vmatpush1.xpose.msra.mxu0 0.0
        %706 = vmatprep.subr.mxu0 0.0
        %707 = vmatpush1.xpose.msra.mxu0 0.0
        %708 = vmatprep.subr.mxu0 0.0
        %709 = vmatpush1.xpose.msra.mxu0 0.0
        %710 = vmatprep.subr.mxu0 0.0
        %711 = vmatpush1.xpose.msra.mxu0 0.0
        %712 = vmatprep.subr.mxu0 0.0
        %713 = vmatpush1.xpose.msra.mxu0 0.0
        %714 = vmatprep.subr.mxu0 0.0
        %715 = vmatpush1.xpose.msra.mxu0 0.0
        %716 = vmatprep.subr.mxu0 0.0
        %717 = vmatpush1.xpose.msra.mxu0 0.0
        %718 = vmatprep.subr.mxu0 0.0
        %719 = vmatpush1.xpose.msra.mxu0 0.0
        %720 = vmatprep.subr.mxu0 0.0
        %721 = vmatpush1.xpose.msra.mxu0 0.0
        %722 = vmatprep.subr.mxu0 0.0
        %723 = vmatpush1.xpose.msra.mxu0 0.0
        %724 = vmatprep.subr.mxu0 0.0
        %725 = vmatpush1.xpose.msra.mxu0 0.0
        %726 = vmatprep.subr.mxu0 0.0
        %727 = vmatpush1.xpose.msra.mxu0 0.0
        %728 = vmatprep.subr.mxu0 0.0
        %729 = vmatpush1.xpose.msra.mxu0 0.0
        %730 = vmatprep.subr.mxu0 0.0
        %731 = vmatpush1.xpose.msra.mxu0 0.0
        %732 = vmatprep.subr.mxu0 0.0
        %733 = vmatpush1.xpose.msra.mxu0 0.0
        %734 = vmatprep.subr.mxu0 0.0
        %735 = vmatpush1.xpose.msra.mxu0 0.0
        %736 = vmatprep.subr.mxu0 0.0
        %737 = vmatpush1.xpose.msra.mxu0 0.0
        %738 = vmatprep.subr.mxu0 0.0
        %739 = vmatpush1.xpose.msra.mxu0 0.0
        %740 = vmatprep.subr.mxu0 0.0
        %741 = vmatpush1.xpose.msra.mxu0 0.0
        %742 = vmatprep.subr.mxu0 0.0
        %743 = vmatpush1.xpose.msra.mxu0 0.0
        %744 = vmatprep.subr.mxu0 0.0
        %745 = vmatpush1.xpose.msra.mxu0 0.0
        %746 = vmatprep.subr.mxu0 0.0
        %747 = vmatpush1.xpose.msra.mxu0 0.0
        %748 = vmatprep.subr.mxu0 0.0
        %749 = vmatpush1.xpose.msra.mxu0 0.0
        %750 = vmatprep.subr.mxu0 0.0
        %751 = vmatpush1.xpose.msra.mxu0 0.0
        %752 = vmatprep.subr.mxu0 0.0
        %753 = vmatpush1.xpose.msra.mxu0 0.0
        %754 = vmatprep.subr.mxu0 0.0
        %755 = vmatpush1.xpose.msra.mxu0 0.0
        %756 = vmatprep.subr.mxu0 0.0
        %757 = vmatpush1.xpose.msra.mxu0 0.0
        %758 = vmatprep.subr.mxu0 0.0
        %759 = vmatpush1.xpose.msra.mxu0 0.0
        %760 = vmatprep.subr.mxu0 0.0
        %761 = vmatpush1.xpose.msra.mxu0 0.0
        %762 = vmatprep.subr.mxu0 0.0
        %763 = vmatpush1.xpose.msra.mxu0 0.0
        %764 = vmatprep.subr.mxu0 0.0
        %765 = vmatpush1.xpose.msra.mxu0 0.0
        %766 = vmatprep.mubr.f32.mxu0 0.0
        %v767 = vand.u32 %v470, 4294901760
        %v768 = vsub.f32 %v470, %v767
        %v769 = vand.u32 %v768, 4294901760
        %770 = vmatmul.mubr.f32.gmra.mrb[0].mxu0 %v769
        %v771 = vpop.f32.mrb[0].mxu0
        %v772 = vadd.f32 %v698, %v771
        %v773 = vpop.f32.mrb[0].mxu0
        %774 = vdwg.mxu0
        %775 = vmatprep.subr.mxu0 0.0
        %v776 = vand.u32 %v473, 4294901760
        %v777 = vsub.f32 %v473, %v776
        %v778 = vand.u32 %v777, 4294901760
        %779 = vmatpush1.xpose.msra.mxu0 %v778
        %780 = vmatprep.subr.mxu0 0.0
        %781 = vmatpush1.xpose.msra.mxu0 0.0
        %782 = vmatprep.subr.mxu0 0.0
        %783 = vmatpush1.xpose.msra.mxu0 0.0
        %784 = vmatprep.subr.mxu0 0.0
        %785 = vmatpush1.xpose.msra.mxu0 0.0
        %786 = vmatprep.subr.mxu0 0.0
        %787 = vmatpush1.xpose.msra.mxu0 0.0
        %788 = vmatprep.subr.mxu0 0.0
        %789 = vmatpush1.xpose.msra.mxu0 0.0
        %790 = vmatprep.subr.mxu0 0.0
        %791 = vmatpush1.xpose.msra.mxu0 0.0
        %792 = vmatprep.subr.mxu0 0.0
        %793 = vmatpush1.xpose.msra.mxu0 0.0
        %794 = vmatprep.subr.mxu0 0.0
        %795 = vmatpush1.xpose.msra.mxu0 0.0
        %796 = vmatprep.subr.mxu0 0.0
        %797 = vmatpush1.xpose.msra.mxu0 0.0
        %798 = vmatprep.subr.mxu0 0.0
        %799 = vmatpush1.xpose.msra.mxu0 0.0
        %800 = vmatprep.subr.mxu0 0.0
        %801 = vmatpush1.xpose.msra.mxu0 0.0
        %802 = vmatprep.subr.mxu0 0.0
        %803 = vmatpush1.xpose.msra.mxu0 0.0
        %804 = vmatprep.subr.mxu0 0.0
        %805 = vmatpush1.xpose.msra.mxu0 0.0
        %806 = vmatprep.subr.mxu0 0.0
        %807 = vmatpush1.xpose.msra.mxu0 0.0
        %808 = vmatprep.subr.mxu0 0.0
        %809 = vmatpush1.xpose.msra.mxu0 0.0
        %810 = vmatprep.subr.mxu0 0.0
        %811 = vmatpush1.xpose.msra.mxu0 0.0
        %812 = vmatprep.subr.mxu0 0.0
        %813 = vmatpush1.xpose.msra.mxu0 0.0
        %814 = vmatprep.subr.mxu0 0.0
        %815 = vmatpush1.xpose.msra.mxu0 0.0
        %816 = vmatprep.subr.mxu0 0.0
        %817 = vmatpush1.xpose.msra.mxu0 0.0
        %818 = vmatprep.subr.mxu0 0.0
        %819 = vmatpush1.xpose.msra.mxu0 0.0
        %820 = vmatprep.subr.mxu0 0.0
        %821 = vmatpush1.xpose.msra.mxu0 0.0
        %822 = vmatprep.subr.mxu0 0.0
        %823 = vmatpush1.xpose.msra.mxu0 0.0
        %824 = vmatprep.subr.mxu0 0.0
        %825 = vmatpush1.xpose.msra.mxu0 0.0
        %826 = vmatprep.subr.mxu0 0.0
        %827 = vmatpush1.xpose.msra.mxu0 0.0
        %828 = vmatprep.subr.mxu0 0.0
        %829 = vmatpush1.xpose.msra.mxu0 0.0
        %830 = vmatprep.subr.mxu0 0.0
        %831 = vmatpush1.xpose.msra.mxu0 0.0
        %832 = vmatprep.subr.mxu0 0.0
        %833 = vmatpush1.xpose.msra.mxu0 0.0
        %834 = vmatprep.subr.mxu0 0.0
        %835 = vmatpush1.xpose.msra.mxu0 0.0
        %836 = vmatprep.subr.mxu0 0.0
        %837 = vmatpush1.xpose.msra.mxu0 0.0
        %838 = vmatprep.subr.mxu0 0.0
        %839 = vmatpush1.xpose.msra.mxu0 0.0
        %840 = vmatprep.subr.mxu0 0.0
        %841 = vmatpush1.xpose.msra.mxu0 0.0
        %842 = vmatprep.mubr.f32.mxu0 0.0
        %v843 = vand.u32 %v470, 4294901760
        %844 = vmatmul.mubr.f32.gmra.mrb[0].mxu0 %v843
        %v845 = vpop.f32.mrb[0].mxu0
        %v846 = vadd.f32 %v772, %v845
        %v847 = vpop.f32.mrb[0].mxu0
        %848 = vdwg.mxu0
        %849 = vmatprep.subr.mxu0 0.0
        %v850 = vand.u32 %v473, 4294901760
        %851 = vmatpush1.xpose.msra.mxu0 %v850
        %852 = vmatprep.subr.mxu0 0.0
        %853 = vmatpush1.xpose.msra.mxu0 0.0
        %854 = vmatprep.subr.mxu0 0.0
        %855 = vmatpush1.xpose.msra.mxu0 0.0
        %856 = vmatprep.subr.mxu0 0.0
        %857 = vmatpush1.xpose.msra.mxu0 0.0
        %858 = vmatprep.subr.mxu0 0.0
        %859 = vmatpush1.xpose.msra.mxu0 0.0
        %860 = vmatprep.subr.mxu0 0.0
        %861 = vmatpush1.xpose.msra.mxu0 0.0
        %862 = vmatprep.subr.mxu0 0.0
        %863 = vmatpush1.xpose.msra.mxu0 0.0
        %864 = vmatprep.subr.mxu0 0.0
        %865 = vmatpush1.xpose.msra.mxu0 0.0
        %866 = vmatprep.subr.mxu0 0.0
        %867 = vmatpush1.xpose.msra.mxu0 0.0
        %868 = vmatprep.subr.mxu0 0.0
        %869 = vmatpush1.xpose.msra.mxu0 0.0
        %870 = vmatprep.subr.mxu0 0.0
        %871 = vmatpush1.xpose.msra.mxu0 0.0
        %872 = vmatprep.subr.mxu0 0.0
        %873 = vmatpush1.xpose.msra.mxu0 0.0
        %874 = vmatprep.subr.mxu0 0.0
        %875 = vmatpush1.xpose.msra.mxu0 0.0
        %876 = vmatprep.subr.mxu0 0.0
        %877 = vmatpush1.xpose.msra.mxu0 0.0
        %878 = vmatprep.subr.mxu0 0.0
        %879 = vmatpush1.xpose.msra.mxu0 0.0
        %880 = vmatprep.subr.mxu0 0.0
        %881 = vmatpush1.xpose.msra.mxu0 0.0
        %882 = vmatprep.subr.mxu0 0.0
        %883 = vmatpush1.xpose.msra.mxu0 0.0
        %884 = vmatprep.subr.mxu0 0.0
        %885 = vmatpush1.xpose.msra.mxu0 0.0
        %886 = vmatprep.subr.mxu0 0.0
        %887 = vmatpush1.xpose.msra.mxu0 0.0
        %888 = vmatprep.subr.mxu0 0.0
        %889 = vmatpush1.xpose.msra.mxu0 0.0
        %890 = vmatprep.subr.mxu0 0.0
        %891 = vmatpush1.xpose.msra.mxu0 0.0
        %892 = vmatprep.subr.mxu0 0.0
        %893 = vmatpush1.xpose.msra.mxu0 0.0
        %894 = vmatprep.subr.mxu0 0.0
        %895 = vmatpush1.xpose.msra.mxu0 0.0
        %896 = vmatprep.subr.mxu0 0.0
        %897 = vmatpush1.xpose.msra.mxu0 0.0
        %898 = vmatprep.subr.mxu0 0.0
        %899 = vmatpush1.xpose.msra.mxu0 0.0
        %900 = vmatprep.subr.mxu0 0.0
        %901 = vmatpush1.xpose.msra.mxu0 0.0
        %902 = vmatprep.subr.mxu0 0.0
        %903 = vmatpush1.xpose.msra.mxu0 0.0
        %904 = vmatprep.subr.mxu0 0.0
        %905 = vmatpush1.xpose.msra.mxu0 0.0
        %906 = vmatprep.subr.mxu0 0.0
        %907 = vmatpush1.xpose.msra.mxu0 0.0
        %908 = vmatprep.subr.mxu0 0.0
        %909 = vmatpush1.xpose.msra.mxu0 0.0
        %910 = vmatprep.subr.mxu0 0.0
        %911 = vmatpush1.xpose.msra.mxu0 0.0
        %912 = vmatprep.subr.mxu0 0.0
        %913 = vmatpush1.xpose.msra.mxu0 0.0
        %914 = vmatprep.mubr.f32.mxu0 0.0
        %v915 = vand.u32 %v470, 4294901760
        %916 = vmatmul.mubr.f32.gmra.mrb[0].mxu0 %v915
        %v917 = vpop.f32.mrb[0].mxu0
        %v918 = vadd.f32 %v846, %v917
        %v919 = vpop.f32.mrb[0].mxu0
        %920 = vdwg.mxu0
        %v921 = vld [vmem:[%s459] sm:$0x3]
        %vm922 = vnez %v921
        %v923 = vsel %vm922, 16843009, 0
        %v924 = vunpack.c.0.s8 %v923
        %vm925 = vcmp.ne.s32.totalorder %v924, 0
        %v926 = vsel %vm925, -1e+09, %v918
        %vm927 = vcmask 64512
        %v928 = vsel %vm927, %v926, -inf
        %929 = vmax.xlane.f32.xlu0 %v928
        %v930 = vpop.xlane.xlu0 %929
        %v931 = vsub.f32 %v926, %v930
        %v932 = vmul.f32 %v931, 1.442695
        %v933 = vpow.pop %v932
        %v934 = vsel %vm927, %v933, 0.0
        %935 = vadd.xlane.f32.xlu0 %v934
        %v936 = vpop.xlane.xlu0 %935
        %v937 = vrcp.pop %v936
        %v938 = vmul.f32 %v933, %v937
        %v940 = vsel %vm927, %v938, 0
        %942 = vmatprep.subr.mxu0 0.0
        %v943 = vand.u32 %v464, 4294901760
        %944 = vmatpush1.msra.mxu0 %v943
        %945 = vmatprep.subr.mxu0 0.0
        %946 = vmatpush1.msra.mxu0 0.0
        %947 = vmatprep.subr.mxu0 0.0
        %948 = vmatpush1.msra.mxu0 0.0
        %949 = vmatprep.subr.mxu0 0.0
        %950 = vmatpush1.msra.mxu0 0.0
        %951 = vmatprep.subr.mxu0 0.0
        %952 = vmatpush1.msra.mxu0 0.0
        %953 = vmatprep.subr.mxu0 0.0
        %954 = vmatpush1.msra.mxu0 0.0
        %955 = vmatprep.subr.mxu0 0.0
        %956 = vmatpush1.msra.mxu0 0.0
        %957 = vmatprep.subr.mxu0 0.0
        %958 = vmatpush1.msra.mxu0 0.0
        %959 = vmatprep.subr.mxu0 0.0
        %960 = vmatpush1.msra.mxu0 0.0
        %961 = vmatprep.subr.mxu0 0.0
        %962 = vmatpush1.msra.mxu0 0.0
        %963 = vmatprep.subr.mxu0 0.0
        %964 = vmatpush1.msra.mxu0 0.0
        %965 = vmatprep.subr.mxu0 0.0
        %966 = vmatpush1.msra.mxu0 0.0
        %967 = vmatprep.subr.mxu0 0.0
        %968 = vmatpush1.msra.mxu0 0.0
        %969 = vmatprep.subr.mxu0 0.0
        %970 = vmatpush1.msra.mxu0 0.0
        %971 = vmatprep.subr.mxu0 0.0
        %972 = vmatpush1.msra.mxu0 0.0
        %973 = vmatprep.subr.mxu0 0.0
        %974 = vmatpush1.msra.mxu0 0.0
        %975 = vmatprep.subr.mxu0 0.0
        %976 = vmatpush1.msra.mxu0 0.0
        %977 = vmatprep.subr.mxu0 0.0
        %978 = vmatpush1.msra.mxu0 0.0
        %979 = vmatprep.subr.mxu0 0.0
        %980 = vmatpush1.msra.mxu0 0.0
        %981 = vmatprep.subr.mxu0 0.0
        %982 = vmatpush1.msra.mxu0 0.0
        %983 = vmatprep.subr.mxu0 0.0
        %984 = vmatpush1.msra.mxu0 0.0
        %985 = vmatprep.subr.mxu0 0.0
        %986 = vmatpush1.msra.mxu0 0.0
        %987 = vmatprep.subr.mxu0 0.0
        %988 = vmatpush1.msra.mxu0 0.0
        %989 = vmatprep.subr.mxu0 0.0
        %990 = vmatpush1.msra.mxu0 0.0
        %991 = vmatprep.subr.mxu0 0.0
        %992 = vmatpush1.msra.mxu0 0.0
        %993 = vmatprep.subr.mxu0 0.0
        %994 = vmatpush1.msra.mxu0 0.0
        %995 = vmatprep.subr.mxu0 0.0
        %996 = vmatpush1.msra.mxu0 0.0
        %997 = vmatprep.subr.mxu0 0.0
        %998 = vmatpush1.msra.mxu0 0.0
        %999 = vmatprep.subr.mxu0 0.0
        %1000 = vmatpush1.msra.mxu0 0.0
        %1001 = vmatprep.subr.mxu0 0.0
        %1002 = vmatpush1.msra.mxu0 0.0
        %1003 = vmatprep.subr.mxu0 0.0
        %1004 = vmatpush1.msra.mxu0 0.0
        %1005 = vmatprep.subr.mxu0 0.0
        %1006 = vmatpush1.msra.mxu0 0.0
        %1007 = vmatprep.mubr.f32.mxu0 0.0
        %v1008 = vand.u32 %v940, 4294901760
        %v1009 = vsub.f32 %v940, %v1008
        %v1010 = vand.u32 %v1009, 4294901760
        %v1011 = vsub.f32 %v1009, %v1010
        %v1012 = vand.u32 %v1011, 4294901760
        %1013 = vmatmul.mubr.f32.gmra.mrb[0].mxu0 %v1012
        %v1014 = vpop.f32.mrb[0].mxu0
        %v1015 = vadd.f32 0.0, %v1014
        %v1016 = vpop.f32.mrb[0].mxu0
        %1017 = vdwg.mxu0
        %1018 = vmatprep.subr.mxu0 0.0
        %v1019 = vand.u32 %v464, 4294901760
        %v1020 = vsub.f32 %v464, %v1019
        %v1021 = vand.u32 %v1020, 4294901760
        %v1022 = vsub.f32 %v1020, %v1021
        %v1023 = vand.u32 %v1022, 4294901760
        %1024 = vmatpush1.msra.mxu0 %v1023
        %1025 = vmatprep.subr.mxu0 0.0
        %1026 = vmatpush1.msra.mxu0 0.0
        %1027 = vmatprep.subr.mxu0 0.0
        %1028 = vmatpush1.msra.mxu0 0.0
        %1029 = vmatprep.subr.mxu0 0.0
        %1030 = vmatpush1.msra.mxu0 0.0
        %1031 = vmatprep.subr.mxu0 0.0
        %1032 = vmatpush1.msra.mxu0 0.0
        %1033 = vmatprep.subr.mxu0 0.0
        %1034 = vmatpush1.msra.mxu0 0.0
        %1035 = vmatprep.subr.mxu0 0.0
        %1036 = vmatpush1.msra.mxu0 0.0
        %1037 = vmatprep.subr.mxu0 0.0
        %1038 = vmatpush1.msra.mxu0 0.0
        %1039 = vmatprep.subr.mxu0 0.0
        %1040 = vmatpush1.msra.mxu0 0.0
        %1041 = vmatprep.subr.mxu0 0.0
        %1042 = vmatpush1.msra.mxu0 0.0
        %1043 = vmatprep.subr.mxu0 0.0
        %1044 = vmatpush1.msra.mxu0 0.0
        %1045 = vmatprep.subr.mxu0 0.0
        %1046 = vmatpush1.msra.mxu0 0.0
        %1047 = vmatprep.subr.mxu0 0.0
        %1048 = vmatpush1.msra.mxu0 0.0
        %1049 = vmatprep.subr.mxu0 0.0
        %1050 = vmatpush1.msra.mxu0 0.0
        %1051 = vmatprep.subr.mxu0 0.0
        %1052 = vmatpush1.msra.mxu0 0.0
        %1053 = vmatprep.subr.mxu0 0.0
        %1054 = vmatpush1.msra.mxu0 0.0
        %1055 = vmatprep.subr.mxu0 0.0
        %1056 = vmatpush1.msra.mxu0 0.0
        %1057 = vmatprep.subr.mxu0 0.0
        %1058 = vmatpush1.msra.mxu0 0.0
        %1059 = vmatprep.subr.mxu0 0.0
        %1060 = vmatpush1.msra.mxu0 0.0
        %1061 = vmatprep.subr.mxu0 0.0
        %1062 = vmatpush1.msra.mxu0 0.0
        %1063 = vmatprep.subr.mxu0 0.0
        %1064 = vmatpush1.msra.mxu0 0.0
        %1065 = vmatprep.subr.mxu0 0.0
        %1066 = vmatpush1.msra.mxu0 0.0
        %1067 = vmatprep.subr.mxu0 0.0
        %1068 = vmatpush1.msra.mxu0 0.0
        %1069 = vmatprep.subr.mxu0 0.0
        %1070 = vmatpush1.msra.mxu0 0.0
        %1071 = vmatprep.subr.mxu0 0.0
        %1072 = vmatpush1.msra.mxu0 0.0
        %1073 = vmatprep.subr.mxu0 0.0
        %1074 = vmatpush1.msra.mxu0 0.0
        %1075 = vmatprep.subr.mxu0 0.0
        %1076 = vmatpush1.msra.mxu0 0.0
        %1077 = vmatprep.subr.mxu0 0.0
        %1078 = vmatpush1.msra.mxu0 0.0
        %1079 = vmatprep.subr.mxu0 0.0
        %1080 = vmatpush1.msra.mxu0 0.0
        %1081 = vmatprep.subr.mxu0 0.0
        %1082 = vmatpush1.msra.mxu0 0.0
        %1083 = vmatprep.subr.mxu0 0.0
        %1084 = vmatpush1.msra.mxu0 0.0
        %1085 = vmatprep.subr.mxu0 0.0
        %1086 = vmatpush1.msra.mxu0 0.0
        %1087 = vmatprep.mubr.f32.mxu0 0.0
        %v1088 = vand.u32 %v940, 4294901760
        %1089 = vmatmul.mubr.f32.gmra.mrb[0].mxu0 %v1088
        %v1090 = vpop.f32.mrb[0].mxu0
        %v1091 = vadd.f32 %v1015, %v1090
        %v1092 = vpop.f32.mrb[0].mxu0
        %1093 = vdwg.mxu0
        %1094 = vmatprep.subr.mxu0 0.0
        %v1095 = vand.u32 %v464, 4294901760
        %v1096 = vsub.f32 %v464, %v1095
        %1097 = vmatpush1.msra.mxu0 %v1096
        %1098 = vmatprep.subr.mxu0 0.0
        %1099 = vmatpush1.msra.mxu0 0.0
        %1100 = vmatprep.subr.mxu0 0.0
        %1101 = vmatpush1.msra.mxu0 0.0
        %1102 = vmatprep.subr.mxu0 0.0
        %1103 = vmatpush1.msra.mxu0 0.0
        %1104 = vmatprep.subr.mxu0 0.0
        %1105 = vmatpush1.msra.mxu0 0.0
        %1106 = vmatprep.subr.mxu0 0.0
        %1107 = vmatpush1.msra.mxu0 0.0
        %1108 = vmatprep.subr.mxu0 0.0
        %1109 = vmatpush1.msra.mxu0 0.0
        %1110 = vmatprep.subr.mxu0 0.0
        %1111 = vmatpush1.msra.mxu0 0.0
        %1112 = vmatprep.subr.mxu0 0.0
        %1113 = vmatpush1.msra.mxu0 0.0
        %1114 = vmatprep.subr.mxu0 0.0
        %1115 = vmatpush1.msra.mxu0 0.0
        %1116 = vmatprep.subr.mxu0 0.0
        %1117 = vmatpush1.msra.mxu0 0.0
        %1118 = vmatprep.subr.mxu0 0.0
        %1119 = vmatpush1.msra.mxu0 0.0
        %1120 = vmatprep.subr.mxu0 0.0
        %1121 = vmatpush1.msra.mxu0 0.0
        %1122 = vmatprep.subr.mxu0 0.0
        %1123 = vmatpush1.msra.mxu0 0.0
        %1124 = vmatprep.subr.mxu0 0.0
        %1125 = vmatpush1.msra.mxu0 0.0
        %1126 = vmatprep.subr.mxu0 0.0
        %1127 = vmatpush1.msra.mxu0 0.0
        %1128 = vmatprep.subr.mxu0 0.0
        %1129 = vmatpush1.msra.mxu0 0.0
        %1130 = vmatprep.subr.mxu0 0.0
        %1131 = vmatpush1.msra.mxu0 0.0
        %1132 = vmatprep.subr.mxu0 0.0
        %1133 = vmatpush1.msra.mxu0 0.0
        %1134 = vmatprep.subr.mxu0 0.0
        %1135 = vmatpush1.msra.mxu0 0.0
        %1136 = vmatprep.subr.mxu0 0.0
        %1137 = vmatpush1.msra.mxu0 0.0
        %1138 = vmatprep.subr.mxu0 0.0
        %1139 = vmatpush1.msra.mxu0 0.0
        %1140 = vmatprep.subr.mxu0 0.0
        %1141 = vmatpush1.msra.mxu0 0.0
        %1142 = vmatprep.subr.mxu0 0.0
        %1143 = vmatpush1.msra.mxu0 0.0
        %1144 = vmatprep.subr.mxu0 0.0
        %1145 = vmatpush1.msra.mxu0 0.0
        %1146 = vmatprep.subr.mxu0 0.0
        %1147 = vmatpush1.msra.mxu0 0.0
        %1148 = vmatprep.subr.mxu0 0.0
        %1149 = vmatpush1.msra.mxu0 0.0
        %1150 = vmatprep.subr.mxu0 0.0
        %1151 = vmatpush1.msra.mxu0 0.0
        %1152 = vmatprep.subr.mxu0 0.0
        %1153 = vmatpush1.msra.mxu0 0.0
        %1154 = vmatprep.subr.mxu0 0.0
        %1155 = vmatpush1.msra.mxu0 0.0
        %1156 = vmatprep.subr.mxu0 0.0
        %1157 = vmatpush1.msra.mxu0 0.0
        %1158 = vmatprep.subr.mxu0 0.0
        %1159 = vmatpush1.msra.mxu0 0.0
        %1160 = vmatprep.mubr.f32.mxu0 0.0
        %v1161 = vand.u32 %v940, 4294901760
        %v1162 = vsub.f32 %v940, %v1161
        %1163 = vmatmul.mubr.f32.gmra.mrb[0].mxu0 %v1162
        %v1164 = vpop.f32.mrb[0].mxu0
        %v1165 = vadd.f32 %v1091, %v1164
        %v1166 = vpop.f32.mrb[0].mxu0
        %1167 = vdwg.mxu0
        %1168 = vmatprep.subr.mxu0 0.0
        %v1169 = vand.u32 %v464, 4294901760
        %1170 = vmatpush1.msra.mxu0 %v1169
        %1171 = vmatprep.subr.mxu0 0.0
        %1172 = vmatpush1.msra.mxu0 0.0
        %1173 = vmatprep.subr.mxu0 0.0
        %1174 = vmatpush1.msra.mxu0 0.0
        %1175 = vmatprep.subr.mxu0 0.0
        %1176 = vmatpush1.msra.mxu0 0.0
        %1177 = vmatprep.subr.mxu0 0.0
        %1178 = vmatpush1.msra.mxu0 0.0
        %1179 = vmatprep.subr.mxu0 0.0
        %1180 = vmatpush1.msra.mxu0 0.0
        %1181 = vmatprep.subr.mxu0 0.0
        %1182 = vmatpush1.msra.mxu0 0.0
        %1183 = vmatprep.subr.mxu0 0.0
        %1184 = vmatpush1.msra.mxu0 0.0
        %1185 = vmatprep.subr.mxu0 0.0
        %1186 = vmatpush1.msra.mxu0 0.0
        %1187 = vmatprep.subr.mxu0 0.0
        %1188 = vmatpush1.msra.mxu0 0.0
        %1189 = vmatprep.subr.mxu0 0.0
        %1190 = vmatpush1.msra.mxu0 0.0
        %1191 = vmatprep.subr.mxu0 0.0
        %1192 = vmatpush1.msra.mxu0 0.0
        %1193 = vmatprep.subr.mxu0 0.0
        %1194 = vmatpush1.msra.mxu0 0.0
        %1195 = vmatprep.subr.mxu0 0.0
        %1196 = vmatpush1.msra.mxu0 0.0
        %1197 = vmatprep.subr.mxu0 0.0
        %1198 = vmatpush1.msra.mxu0 0.0
        %1199 = vmatprep.subr.mxu0 0.0
        %1200 = vmatpush1.msra.mxu0 0.0
        %1201 = vmatprep.subr.mxu0 0.0
        %1202 = vmatpush1.msra.mxu0 0.0
        %1203 = vmatprep.subr.mxu0 0.0
        %1204 = vmatpush1.msra.mxu0 0.0
        %1205 = vmatprep.subr.mxu0 0.0
        %1206 = vmatpush1.msra.mxu0 0.0
        %1207 = vmatprep.subr.mxu0 0.0
        %1208 = vmatpush1.msra.mxu0 0.0
        %1209 = vmatprep.subr.mxu0 0.0
        %1210 = vmatpush1.msra.mxu0 0.0
        %1211 = vmatprep.subr.mxu0 0.0
        %1212 = vmatpush1.msra.mxu0 0.0
        %1213 = vmatprep.subr.mxu0 0.0
        %1214 = vmatpush1.msra.mxu0 0.0
        %1215 = vmatprep.subr.mxu0 0.0
        %1216 = vmatpush1.msra.mxu0 0.0
        %1217 = vmatprep.subr.mxu0 0.0
        %1218 = vmatpush1.msra.mxu0 0.0
        %1219 = vmatprep.subr.mxu0 0.0
        %1220 = vmatpush1.msra.mxu0 0.0
        %1221 = vmatprep.subr.mxu0 0.0
        %1222 = vmatpush1.msra.mxu0 0.0
        %1223 = vmatprep.subr.mxu0 0.0
        %1224 = vmatpush1.msra.mxu0 0.0
        %1225 = vmatprep.subr.mxu0 0.0
        %1226 = vmatpush1.msra.mxu0 0.0
        %1227 = vmatprep.subr.mxu0 0.0
        %1228 = vmatpush1.msra.mxu0 0.0
        %1229 = vmatprep.subr.mxu0 0.0
        %1230 = vmatpush1.msra.mxu0 0.0
        %1231 = vmatprep.subr.mxu0 0.0
        %1232 = vmatpush1.msra.mxu0 0.0
        %1233 = vmatprep.mubr.f32.mxu0 0.0
        %v1234 = vand.u32 %v940, 4294901760
        %v1235 = vsub.f32 %v940, %v1234
        %v1236 = vand.u32 %v1235, 4294901760
        %1237 = vmatmul.mubr.f32.gmra.mrb[0].mxu0 %v1236
        %v1238 = vpop.f32.mrb[0].mxu0
        %v1239 = vadd.f32 %v1165, %v1238
        %v1240 = vpop.f32.mrb[0].mxu0
        %1241 = vdwg.mxu0
        %1242 = vmatprep.subr.mxu0 0.0
        %v1243 = vand.u32 %v464, 4294901760
        %v1244 = vsub.f32 %v464, %v1243
        %v1245 = vand.u32 %v1244, 4294901760
        %1246 = vmatpush1.msra.mxu0 %v1245
        %1247 = vmatprep.subr.mxu0 0.0
        %1248 = vmatpush1.msra.mxu0 0.0
        %1249 = vmatprep.subr.mxu0 0.0
        %1250 = vmatpush1.msra.mxu0 0.0
        %1251 = vmatprep.subr.mxu0 0.0
        %1252 = vmatpush1.msra.mxu0 0.0
        %1253 = vmatprep.subr.mxu0 0.0
        %1254 = vmatpush1.msra.mxu0 0.0
        %1255 = vmatprep.subr.mxu0 0.0
        %1256 = vmatpush1.msra.mxu0 0.0
        %1257 = vmatprep.subr.mxu0 0.0
        %1258 = vmatpush1.msra.mxu0 0.0
        %1259 = vmatprep.subr.mxu0 0.0
        %1260 = vmatpush1.msra.mxu0 0.0
        %1261 = vmatprep.subr.mxu0 0.0
        %1262 = vmatpush1.msra.mxu0 0.0
        %1263 = vmatprep.subr.mxu0 0.0
        %1264 = vmatpush1.msra.mxu0 0.0
        %1265 = vmatprep.subr.mxu0 0.0
        %1266 = vmatpush1.msra.mxu0 0.0
        %1267 = vmatprep.subr.mxu0 0.0
        %1268 = vmatpush1.msra.mxu0 0.0
        %1269 = vmatprep.subr.mxu0 0.0
        %1270 = vmatpush1.msra.mxu0 0.0
        %1271 = vmatprep.subr.mxu0 0.0
        %1272 = vmatpush1.msra.mxu0 0.0
        %1273 = vmatprep.subr.mxu0 0.0
        %1274 = vmatpush1.msra.mxu0 0.0
        %1275 = vmatprep.subr.mxu0 0.0
        %1276 = vmatpush1.msra.mxu0 0.0
        %1277 = vmatprep.subr.mxu0 0.0
        %1278 = vmatpush1.msra.mxu0 0.0
        %1279 = vmatprep.subr.mxu0 0.0
        %1280 = vmatpush1.msra.mxu0 0.0
        %1281 = vmatprep.subr.mxu0 0.0
        %1282 = vmatpush1.msra.mxu0 0.0
        %1283 = vmatprep.subr.mxu0 0.0
        %1284 = vmatpush1.msra.mxu0 0.0
        %1285 = vmatprep.subr.mxu0 0.0
        %1286 = vmatpush1.msra.mxu0 0.0
        %1287 = vmatprep.subr.mxu0 0.0
        %1288 = vmatpush1.msra.mxu0 0.0
        %1289 = vmatprep.subr.mxu0 0.0
        %1290 = vmatpush1.msra.mxu0 0.0
        %1291 = vmatprep.subr.mxu0 0.0
        %1292 = vmatpush1.msra.mxu0 0.0
        %1293 = vmatprep.subr.mxu0 0.0
        %1294 = vmatpush1.msra.mxu0 0.0
        %1295 = vmatprep.subr.mxu0 0.0
        %1296 = vmatpush1.msra.mxu0 0.0
        %1297 = vmatprep.subr.mxu0 0.0
        %1298 = vmatpush1.msra.mxu0 0.0
        %1299 = vmatprep.subr.mxu0 0.0
        %1300 = vmatpush1.msra.mxu0 0.0
        %1301 = vmatprep.subr.mxu0 0.0
        %1302 = vmatpush1.msra.mxu0 0.0
        %1303 = vmatprep.subr.mxu0 0.0
        %1304 = vmatpush1.msra.mxu0 0.0
        %1305 = vmatprep.subr.mxu0 0.0
        %1306 = vmatpush1.msra.mxu0 0.0
        %1307 = vmatprep.subr.mxu0 0.0
        %1308 = vmatpush1.msra.mxu0 0.0
        %1309 = vmatprep.mubr.f32.mxu0 0.0
        %v1310 = vand.u32 %v940, 4294901760
        %1311 = vmatmul.mubr.f32.gmra.mrb[0].mxu0 %v1310
        %v1312 = vpop.f32.mrb[0].mxu0
        %v1313 = vadd.f32 %v1239, %v1312
        %v1314 = vpop.f32.mrb[0].mxu0
        %1315 = vdwg.mxu0
        %1316 = vmatprep.subr.mxu0 0.0
        %v1317 = vand.u32 %v464, 4294901760
        %1318 = vmatpush1.msra.mxu0 %v1317
        %1319 = vmatprep.subr.mxu0 0.0
        %1320 = vmatpush1.msra.mxu0 0.0
        %1321 = vmatprep.subr.mxu0 0.0
        %1322 = vmatpush1.msra.mxu0 0.0
        %1323 = vmatprep.subr.mxu0 0.0
        %1324 = vmatpush1.msra.mxu0 0.0
        %1325 = vmatprep.subr.mxu0 0.0
        %1326 = vmatpush1.msra.mxu0 0.0
        %1327 = vmatprep.subr.mxu0 0.0
        %1328 = vmatpush1.msra.mxu0 0.0
        %1329 = vmatprep.subr.mxu0 0.0
        %1330 = vmatpush1.msra.mxu0 0.0
        %1331 = vmatprep.subr.mxu0 0.0
        %1332 = vmatpush1.msra.mxu0 0.0
        %1333 = vmatprep.subr.mxu0 0.0
        %1334 = vmatpush1.msra.mxu0 0.0
        %1335 = vmatprep.subr.mxu0 0.0
        %1336 = vmatpush1.msra.mxu0 0.0
        %1337 = vmatprep.subr.mxu0 0.0
        %1338 = vmatpush1.msra.mxu0 0.0
        %1339 = vmatprep.subr.mxu0 0.0
        %1340 = vmatpush1.msra.mxu0 0.0
        %1341 = vmatprep.subr.mxu0 0.0
        %1342 = vmatpush1.msra.mxu0 0.0
        %1343 = vmatprep.subr.mxu0 0.0
        %1344 = vmatpush1.msra.mxu0 0.0
        %1345 = vmatprep.subr.mxu0 0.0
        %1346 = vmatpush1.msra.mxu0 0.0
        %1347 = vmatprep.subr.mxu0 0.0
        %1348 = vmatpush1.msra.mxu0 0.0
        %1349 = vmatprep.subr.mxu0 0.0
        %1350 = vmatpush1.msra.mxu0 0.0
        %1351 = vmatprep.subr.mxu0 0.0
        %1352 = vmatpush1.msra.mxu0 0.0
        %1353 = vmatprep.subr.mxu0 0.0
        %1354 = vmatpush1.msra.mxu0 0.0
        %1355 = vmatprep.subr.mxu0 0.0
        %1356 = vmatpush1.msra.mxu0 0.0
        %1357 = vmatprep.subr.mxu0 0.0
        %1358 = vmatpush1.msra.mxu0 0.0
        %1359 = vmatprep.subr.mxu0 0.0
        %1360 = vmatpush1.msra.mxu0 0.0
        %1361 = vmatprep.subr.mxu0 0.0
        %1362 = vmatpush1.msra.mxu0 0.0
        %1363 = vmatprep.subr.mxu0 0.0
        %1364 = vmatpush1.msra.mxu0 0.0
        %1365 = vmatprep.subr.mxu0 0.0
        %1366 = vmatpush1.msra.mxu0 0.0
        %1367 = vmatprep.subr.mxu0 0.0
        %1368 = vmatpush1.msra.mxu0 0.0
        %1369 = vmatprep.subr.mxu0 0.0
        %1370 = vmatpush1.msra.mxu0 0.0
        %1371 = vmatprep.subr.mxu0 0.0
        %1372 = vmatpush1.msra.mxu0 0.0
        %1373 = vmatprep.subr.mxu0 0.0
        %1374 = vmatpush1.msra.mxu0 0.0
        %1375 = vmatprep.subr.mxu0 0.0
        %1376 = vmatpush1.msra.mxu0 0.0
        %1377 = vmatprep.subr.mxu0 0.0
        %1378 = vmatpush1.msra.mxu0 0.0
        %1379 = vmatprep.subr.mxu0 0.0
        %1380 = vmatpush1.msra.mxu0 0.0
        %1381 = vmatprep.mubr.f32.mxu0 0.0
        %v1382 = vand.u32 %v940, 4294901760
        %1383 = vmatmul.mubr.f32.gmra.mrb[0].mxu0 %v1382
        %v1384 = vpop.f32.mrb[0].mxu0
        %v1385 = vadd.f32 %v1313, %v1384
        %v1386 = vpop.f32.mrb[0].mxu0
        %1387 = vdwg.mxu0
        %1388 = vst.msk [vmem:[%s452] sm:$0xff] %vm927, %v938
        %1389 = vst.msk [vmem:[%s445] sm:$0xff] %vm468, %v1385
        %s1390 = sand.u32 %s206, 1
        %s1391 = scalar_lea.sflag [#allocation4], %s1390
        %s1392 = sand.u32 %s206, 1
        %s1393 = smul.addr %s1392, 8
        %s1394 = scalar_lea.vmem [#allocation10], %s1393
        %s1395 = sand.u32 %s236, 1
        %s1396 = scalar_lea.sflag [#allocation12], %s1395
        %s1397 = sand.u32 %s236, 1
        %s1398 = smul.addr %s1397, 8
        %s1399 = scalar_lea.vmem [#allocation11], %s1398
        // Predicated region
        $region57: #{tpu_custom_call.1} parent=39 // pred_check
          %p1400 = pneg %p216
        $region58: #{tpu_custom_call.1} parent=39 // pred_check_branch
          %1402 = sbr.rel (%p1400) target = $region60
        $region59: #{tpu_custom_call.1} parent=39 // pred_region
          %s1404 = ssub.s32 128, 128
          %1405 = vsyncadd %s1391, %s1404
          %s1406 = sadd.s32 %s40, %s39
          %s1407 = smul.addr %s38, 4
          %s1408 = sadd.s32 %s1406, %s1407
          %s1409 = smul.addr %s1408, 128
          %s1410 = scalar_lea.hbm %s5, %s1409
          %s1412 = sshll.u32 %s1394, 4
          %s1413 = int_to_ptr.vmem [resolvable:$true] %s1412
          %1415 = dma.vmem_to_hbm [thread:$0]  %s1413, 128, %s1410, %s1391
        $region60: #{tpu_custom_call.1} parent=39 // pred_fallthru
          _
        // Predicated region
        $region61: #{tpu_custom_call.1} parent=39 // pred_check
          %p1416 = pneg %p246
        $region62: #{tpu_custom_call.1} parent=39 // pred_check_branch
          %1418 = sbr.rel (%p1416) target = $region64
        $region63: #{tpu_custom_call.1} parent=39 // pred_region
          %s1420 = ssub.s32 128, 128
          %1421 = vsyncadd %s1396, %s1420
          %s1422 = sadd.s32 %s40, %s39
          %s1423 = smul.addr %s38, 4
          %s1424 = sadd.s32 %s1422, %s1423
          %s1425 = smul.addr %s1424, 128
          %s1426 = scalar_lea.hbm %s6, %s1425
          %s1428 = sshll.u32 %s1399, 4
          %s1429 = int_to_ptr.vmem [resolvable:$true] %s1428
          %1431 = dma.vmem_to_hbm [thread:$0]  %s1429, 128, %s1426, %s1396
        $region64: #{tpu_custom_call.1} parent=39 // pred_fallthru
          _
      $region40: #{tpu_custom_call.1} parent=5 // pred_fallthru
        _
      %p1432 = scmp.le.s32.totalorder 2, %s28
      // Predicated region
      $region65: #{tpu_custom_call.1} parent=5 // pred_check
        %p1433 = pneg %p1432
      $region66: #{tpu_custom_call.1} parent=5 // pred_check_branch
        %1435 = sbr.rel (%p1433) target = $region68
      $region67: #{tpu_custom_call.1} parent=5 // pred_region
        %s1436 = ssub.s32 %s28, 2
        // Predicated region
        $region69: #{tpu_custom_call.1} parent=67 // pred_check
          %p1437 = pneg %p222
        $region70: #{tpu_custom_call.1} parent=67 // pred_check_branch
          %1439 = sbr.rel (%p1437) target = $region72
        $region71: #{tpu_custom_call.1} parent=67 // pred_region
          %s1440 = sand.u32 %s207, 1
          %s1441 = scalar_lea.sflag [#allocation4], %s1440
          %s1442 = sand.u32 %s207, 1
          %s1443 = smul.addr %s1442, 8
          %s1444 = scalar_lea.vmem [#allocation10], %s1443
          %1445 = dma.done %s1441, 128
        $region72: #{tpu_custom_call.1} parent=67 // pred_fallthru
          _
        // Predicated region
        $region73: #{tpu_custom_call.1} parent=67 // pred_check
          %p1446 = pneg %p252
        $region74: #{tpu_custom_call.1} parent=67 // pred_check_branch
          %1448 = sbr.rel (%p1446) target = $region76
        $region75: #{tpu_custom_call.1} parent=67 // pred_region
          %s1449 = sand.u32 %s237, 1
          %s1450 = scalar_lea.sflag [#allocation12], %s1449
          %s1451 = sand.u32 %s237, 1
          %s1452 = smul.addr %s1451, 8
          %s1453 = scalar_lea.vmem [#allocation11], %s1452
          %1454 = dma.done %s1450, 128
        $region76: #{tpu_custom_call.1} parent=67 // pred_fallthru
          _
      $region68: #{tpu_custom_call.1} parent=5 // pred_fallthru
        _
    $region6: #{tpu_custom_call.1} parent=1 // loop_footer
      %s32 = sadd.s32 1, %s28
    $region7: #{tpu_custom_call.1} parent=1 // loop_footer_branch
      %27 = sbr.rel target = $region3
    $region8: #{tpu_custom_call.1} parent=1 // loop_exit
      _
    %1455 = vsyncpa [#allocation3], 1
    %s1456 = scalar_lea.sflag [#allocation3], 1
    %1457 = vsyncpa %s1456, 1
    %1458 = vsyncpa [#allocation6], 1
    %s1459 = scalar_lea.sflag [#allocation6], 1
    %1460 = vsyncpa %s1459, 1
    %1461 = vsyncpa [#allocation9], 1
    %s1462 = scalar_lea.sflag [#allocation9], 1
    %1463 = vsyncpa %s1462, 1
    %1464 = vsyncpa [#allocation4], 1
    %s1465 = scalar_lea.sflag [#allocation4], 1
    %1466 = vsyncpa %s1465, 1
    %1467 = vsyncpa [#allocation12], 1
    %s1468 = scalar_lea.sflag [#allocation12], 1
    %1469 = vsyncpa %s1468, 1

</llo_original>
